<compile_context>
chip_gen: v7x
topology: tpu7x:2x2x1
jax: 0.10.0
libtpu: 0.0.40
codegen_flags: <defaults>
</compile_context>

<pallas_src>
import functools

import jax
import jax.numpy as jnp
from jax.experimental import pallas as pl
from jax.experimental.pallas import tpu as pltpu


# -----------------------------------------------------------------------------
# Kernel
# -----------------------------------------------------------------------------
def _issue_row_gathers(idx_ref, table_hbm, buf, sem, idx_row, base, count):
    """Start `count` row-gather DMAs: table_hbm[idx[idx_row, base + b]] -> buf[b]."""

    def body(b, carry):
        row = idx_ref[idx_row, base + b]
        pltpu.make_async_copy(table_hbm.at[row], buf.at[b], sem).start()
        return carry

    jax.lax.fori_loop(0, count, body, 0)


def _wait_row_gathers(table_hbm, buf, sem, count):
    """Wait for `count` row-gather DMAs previously issued on `sem`."""

    def body(b, carry):
        # All copies on `sem` move exactly one table row (same byte count), so
        # waiting with a same-shaped placeholder descriptor is the standard pattern.
        pltpu.make_async_copy(table_hbm.at[0], buf.at[0], sem).wait()
        return carry

    jax.lax.fori_loop(0, count, body, 0)


def transe_kernel(idx_ref,                      # SMEM int32 [6, B_pad] (scalar prefetch)
                  ent_hbm, rel_hbm,             # HBM  f32 [E, Dp], [R, Dp]
                  pos_dist_ref, neg_dist_ref,   # VMEM f32 [1, TB]
                  hinge_ref,                    # VMEM f32 [1, TB]
                  hp_buf, rp_buf, tp_buf,       # VMEM f32 [TB, Dp] scratch (pos h/r/t)
                  hn_buf, rn_buf, tn_buf,       # VMEM f32 [TB, Dp] scratch (neg h/r/t)
                  sems,                         # DMA semaphores [6]
                  *, norm, margin, batch_size, block_b):
    i = pl.program_id(0)
    base = pl.multiple_of(i * block_b, block_b)

    # ---- gather: issue all 6*block_b row DMAs before any wait so they overlap ----
    _issue_row_gathers(idx_ref, ent_hbm, hp_buf, sems.at[0], 0, base, block_b)  # pos heads
    _issue_row_gathers(idx_ref, rel_hbm, rp_buf, sems.at[1], 1, base, block_b)  # pos rels
    _issue_row_gathers(idx_ref, ent_hbm, tp_buf, sems.at[2], 2, base, block_b)  # pos tails
    _issue_row_gathers(idx_ref, ent_hbm, hn_buf, sems.at[3], 3, base, block_b)  # neg heads
    _issue_row_gathers(idx_ref, rel_hbm, rn_buf, sems.at[4], 4, base, block_b)  # neg rels
    _issue_row_gathers(idx_ref, ent_hbm, tn_buf, sems.at[5], 5, base, block_b)  # neg tails

    _wait_row_gathers(ent_hbm, hp_buf, sems.at[0], block_b)
    _wait_row_gathers(rel_hbm, rp_buf, sems.at[1], block_b)
    _wait_row_gathers(ent_hbm, tp_buf, sems.at[2], block_b)
    _wait_row_gathers(ent_hbm, hn_buf, sems.at[3], block_b)
    _wait_row_gathers(rel_hbm, rn_buf, sems.at[4], block_b)
    _wait_row_gathers(ent_hbm, tn_buf, sems.at[5], block_b)

    # ---- distance: || h + r - t ||_p per triple -------------------------------
    pd = hp_buf[...] + rp_buf[...] - tp_buf[...]          # [TB, Dp]
    nd = hn_buf[...] + rn_buf[...] - tn_buf[...]          # [TB, Dp]
    if norm == 1:
        pmag, nmag = jnp.abs(pd), jnp.abs(nd)
    else:  # p = 2
        pmag, nmag = pd * pd, nd * nd

    # Row-sum over D as ones(1, Dp) @ X^T on the MXU: the result lands directly in
    # the lane-major (1, TB) layout, so the output stores below are full-lane,
    # unmasked vector stores (lane-dense outputs).
    dpad = pmag.shape[1]
    ones = jnp.ones((1, dpad), jnp.float32)
    contract_last = (((1,), (1,)), ((), ()))              # A @ B^T
    pos_red = jax.lax.dot_general(ones, pmag, contract_last,
                                  precision=jax.lax.Precision.HIGHEST,
                                  preferred_element_type=jnp.float32)   # [1, TB]
    neg_red = jax.lax.dot_general(ones, nmag, contract_last,
                                  precision=jax.lax.Precision.HIGHEST,
                                  preferred_element_type=jnp.float32)   # [1, TB]
    if norm == 1:
        pos_d, neg_d = pos_red, neg_red
    else:
        # NOTE: if a backward pass is ever wired up, switch to sqrt(x + eps) to
        # avoid a NaN gradient when h + r - t == 0.
        pos_d, neg_d = jnp.sqrt(pos_red), jnp.sqrt(neg_red)

    pos_dist_ref[...] = pos_d
    neg_dist_ref[...] = neg_d

    # ---- per-triple hinge of MarginRankingLoss(margin)(pos, neg, target=-1) ----
    #      max(0, pos - neg + margin), zeroed for batch-padding lanes.
    lane = jax.lax.broadcasted_iota(jnp.int32, (1, block_b), 1)
    valid = (base + lane) < batch_size
    hinge = jnp.maximum(pos_d - neg_d + margin, 0.0)
    hinge_ref[...] = jnp.where(valid, hinge, 0.0)


# -----------------------------------------------------------------------------
# Wrapper
# -----------------------------------------------------------------------------
@functools.partial(jax.jit, static_argnames=("norm", "margin", "block_b"))
def transe_forward(ent_emb, rel_emb, pos_triples, neg_triples,
                   norm=2, margin=1.0, block_b=128):
    """TransE forward. Returns (loss, pos_distances[B], neg_distances[B]).

    pos_triples / neg_triples: int [B, 3] (head, rel, tail) index triples.
    """
    if norm not in (1, 2):
        raise ValueError("norm must be 1 or 2")
    B = pos_triples.shape[0]
    D = ent_emb.shape[1]

    # Pad embed dim to a multiple of 128 (lane-dense; zero padding preserves the
    # p-norms). In production store the tables pre-padded to avoid per-step pads.
    d_pad = ((D + 127) // 128) * 128
    if d_pad != D:
        ent_emb = jnp.pad(ent_emb, ((0, 0), (0, d_pad - D)))
        rel_emb = jnp.pad(rel_emb, ((0, 0), (0, d_pad - D)))

    # Batch tiling.
    tb = block_b
    nb = -(-B // tb)
    b_pad = nb * tb

    # Triple indices, int32 [6, B_pad]; rows: pos_h, pos_r, pos_t, neg_h, neg_r, neg_t.
    # Scalar-prefetched into SMEM. Padded with index 0 (valid row) so every block
    # issues exactly block_b DMAs per buffer; padded lanes are masked in-kernel.
    idx = jnp.concatenate(
        [pos_triples.T.astype(jnp.int32), neg_triples.T.astype(jnp.int32)], axis=0)
    if b_pad != B:
        idx = jnp.pad(idx, ((0, 0), (0, b_pad - B)))

    kernel = functools.partial(
        transe_kernel, norm=norm, margin=float(margin), batch_size=B, block_b=tb)

    grid_spec = pltpu.PrefetchScalarGridSpec(
        num_scalar_prefetch=1,
        grid=(nb,),
        in_specs=[
            pl.BlockSpec(memory_space=pl.ANY),   # entity table stays in HBM
            pl.BlockSpec(memory_space=pl.ANY),   # relation table stays in HBM
        ],
        out_specs=(
            pl.BlockSpec((1, tb), lambda i, idx_ref: (0, i)),
            pl.BlockSpec((1, tb), lambda i, idx_ref: (0, i)),
            pl.BlockSpec((1, tb), lambda i, idx_ref: (0, i)),
        ),
        scratch_shapes=[pltpu.VMEM((tb, d_pad), jnp.float32)] * 6
                       + [pltpu.SemaphoreType.DMA((6,))],
    )

    cost = pl.CostEstimate(
        flops=10 * b_pad * d_pad,                       # elementwise + 2 reduction matmuls
        transcendentals=2 * b_pad if norm == 2 else 0,  # sqrt
        bytes_accessed=6 * b_pad * d_pad * 4 + 6 * b_pad * 4 + 3 * b_pad * 4,
    )

    pos_dist, neg_dist, hinge = pl.pallas_call(
        kernel,
        out_shape=(
            jax.ShapeDtypeStruct((1, b_pad), jnp.float32),   # pos distances (lane-dense)
            jax.ShapeDtypeStruct((1, b_pad), jnp.float32),   # neg distances (lane-dense)
            jax.ShapeDtypeStruct((1, b_pad), jnp.float32),   # per-triple hinge (masked)
        ),
        grid_spec=grid_spec,
        compiler_params=pltpu.CompilerParams(
            dimension_semantics=("parallel",)),
        cost_estimate=cost,
    )(idx, ent_emb.astype(jnp.float32), rel_emb.astype(jnp.float32))

    # MarginRankingLoss(margin)(pos, neg, target=-1), mean reduction. The per-triple
    # hinge is computed (and padding-masked) in-kernel; only the tiny mean is here.
    loss = jnp.sum(hinge) / B
    return loss, pos_dist[0, :B], neg_dist[0, :B]


# -----------------------------------------------------------------------------
# Host-side helpers (match the PyTorch module's init / sampler semantics)
# -----------------------------------------------------------------------------
def xavier_normalized_embedding(key, num, dim):
    # torch.nn.init.xavier_uniform_ followed by F.normalize(p=2, dim=1)
    bound = (6.0 / (num + dim)) ** 0.5
    w = jax.random.uniform(key, (num, dim), jnp.float32, -bound, bound)
    return w / jnp.linalg.norm(w, axis=1, keepdims=True)


def random_negative_sample(key, heads, rels, tails, ent_num):
    # Functional equivalent of RandomNegativeSampler.neg_sample: replace head
    # (coin==1) or tail (coin==0) with a random entity guaranteed different from
    # the original (offset-mod trick instead of the host-side while-loop).
    k1, k2, k3 = jax.random.split(key, 3)
    head_or_tail = jax.random.randint(k1, heads.shape, 0, 2)
    rand_h = (heads + 1 + jax.random.randint(k2, heads.shape, 0, ent_num - 1)) % ent_num
    rand_t = (tails + 1 + jax.random.randint(k3, tails.shape, 0, ent_num - 1)) % ent_num
    corrupted_heads = jnp.where(head_or_tail == 1, rand_h, heads)
    corrupted_tails = jnp.where(head_or_tail == 0, rand_t, tails)
    return jnp.stack([corrupted_heads, rels, corrupted_tails], axis=1)


if __name__ == "__main__":
    ENT_NUM, REL_NUM, EMBED_DIM = 64, 16, 32
    BATCH, NORM, MARGIN = 8, 2, 1.0

    key = jax.random.PRNGKey(0)
    k_ent, k_rel, k_h, k_r, k_t, k_neg = jax.random.split(key, 6)

    ent_emb = xavier_normalized_embedding(k_ent, ENT_NUM, EMBED_DIM)
    rel_emb = xavier_normalized_embedding(k_rel, REL_NUM, EMBED_DIM)

    pos_heads = jax.random.randint(k_h, (BATCH,), 0, ENT_NUM)
    pos_rels = jax.random.randint(k_r, (BATCH,), 0, REL_NUM)
    pos_tails = jax.random.randint(k_t, (BATCH,), 0, ENT_NUM)
    pos_triples = jnp.stack([pos_heads, pos_rels, pos_tails], axis=1)
    neg_triples = random_negative_sample(k_neg, pos_heads, pos_rels, pos_tails, ENT_NUM)

    loss, pos_dist, neg_dist = transe_forward(
        ent_emb, rel_emb, pos_triples, neg_triples, norm=NORM, margin=MARGIN)
    jax.block_until_ready((loss, pos_dist, neg_dist))

    # Pure-JAX reference of the forward semantics.
    def ref_distance(trips):
        h = ent_emb[trips[:, 0]]
        r = rel_emb[trips[:, 1]]
        t = ent_emb[trips[:, 2]]
        d = h + r - t
        if NORM == 1:
            return jnp.sum(jnp.abs(d), axis=1)
        return jnp.sqrt(jnp.sum(d * d, axis=1))

    ref_pos = ref_distance(pos_triples)
    ref_neg = ref_distance(neg_triples)
    ref_loss = jnp.mean(jnp.maximum(ref_pos - ref_neg + MARGIN, 0.0))

    assert jnp.allclose(pos_dist, ref_pos, rtol=5e-3, atol=5e-3), (pos_dist, ref_pos)
    assert jnp.allclose(neg_dist, ref_neg, rtol=5e-3, atol=5e-3), (neg_dist, ref_neg)
    assert jnp.allclose(loss, ref_loss, rtol=5e-3, atol=5e-3), (loss, ref_loss)

    print("KERNEL_OK")
</pallas_src>

<mosaic_0001>
module attributes {stable_mosaic.version = 11 : i64} {
  func.func @transe_kernel(%arg0: i32, %arg1: memref<6x128xi32, #tpu.memory_space<smem>>, %arg2: memref<64x128xf32, #tpu.memory_space<any>>, %arg3: memref<16x128xf32, #tpu.memory_space<any>>, %arg4: memref<1x128xf32, #tpu.memory_space<vmem>>, %arg5: memref<1x128xf32, #tpu.memory_space<vmem>>, %arg6: memref<1x128xf32, #tpu.memory_space<vmem>>, %arg7: memref<128x128xf32, #tpu.memory_space<vmem>>, %arg8: memref<128x128xf32, #tpu.memory_space<vmem>>, %arg9: memref<128x128xf32, #tpu.memory_space<vmem>>, %arg10: memref<128x128xf32, #tpu.memory_space<vmem>>, %arg11: memref<128x128xf32, #tpu.memory_space<vmem>>, %arg12: memref<128x128xf32, #tpu.memory_space<vmem>>, %arg13: memref<6x!tpu.dma_semaphore, #tpu.memory_space<semaphore_mem>>) attributes {dimension_semantics = [#tpu.dimension_semantics<parallel>], iteration_bounds = array<i64: 1>, scalar_prefetch = 1 : i64, scratch_operands = 7 : i64, tpu.core_type = #tpu.core_type<tc>, window_params = [{}, {}, {transform_indices = @transform_2, window_bounds = array<i64: 1, 128>}, {transform_indices = @transform_3, window_bounds = array<i64: 1, 128>}, {transform_indices = @transform_4, window_bounds = array<i64: 1, 128>}]} {
    %c128_i32 = arith.constant 128 : i32
    %0 = arith.muli %arg0, %c128_i32 : i32
    %1 = tpu.assume_multiple %0, 128 : i32
    %c0_i32 = arith.constant 0 : i32
    %c0_i32_0 = arith.constant 0 : i32
    %c128_i32_1 = arith.constant 128 : i32
    %2 = arith.addi %c0_i32_0, %c128_i32_1 : i32
    %c1_i32 = arith.constant 1 : i32
    scf.for %arg14 = %c0_i32_0 to %2 step %c1_i32  : i32 {
      %46 = arith.addi %1, %arg14 : i32
      %c0_70 = arith.constant 0 : index
      %47 = arith.index_cast %46 : i32 to index
      %48 = memref.load %arg1[%c0_70, %47] : memref<6x128xi32, #tpu.memory_space<smem>>
      %c0_i32_71 = arith.constant 0 : i32
      %49 = tpu.memref_slice %arg2[%48, %c0_i32_71] : memref<64x128xf32, #tpu.memory_space<any>> -> memref<1x128xf32, #tpu.memory_space<any>>
      %50 = tpu.memref_squeeze %49 : memref<1x128xf32, #tpu.memory_space<any>> -> memref<128xf32, #tpu.memory_space<any>>
      %c0_i32_72 = arith.constant 0 : i32
      %51 = tpu.memref_slice %arg7[%arg14, %c0_i32_72] : memref<128x128xf32, #tpu.memory_space<vmem>> -> memref<1x128xf32, #tpu.memory_space<vmem>>
      %52 = tpu.memref_squeeze %51 : memref<1x128xf32, #tpu.memory_space<vmem>> -> memref<128xf32, #tpu.memory_space<vmem>>
      %53 = tpu.memref_slice %arg13[%c0_i32] : memref<6x!tpu.dma_semaphore, #tpu.memory_space<semaphore_mem>> -> memref<1x!tpu.dma_semaphore, #tpu.memory_space<semaphore_mem>>
      %54 = tpu.memref_squeeze %53 : memref<1x!tpu.dma_semaphore, #tpu.memory_space<semaphore_mem>> -> memref<!tpu.dma_semaphore, #tpu.memory_space<semaphore_mem>>
      tpu.enqueue_dma source(%50 : memref<128xf32, #tpu.memory_space<any>>) target(%52 : memref<128xf32, #tpu.memory_space<vmem>>) target_semaphore(%54 : memref<!tpu.dma_semaphore, #tpu.memory_space<semaphore_mem>>)
    }
    %c128_i32_2 = arith.constant 128 : i32
    %c1_i32_3 = arith.constant 1 : i32
    %c0_i32_4 = arith.constant 0 : i32
    %c128_i32_5 = arith.constant 128 : i32
    %3 = arith.addi %c0_i32_4, %c128_i32_5 : i32
    %c1_i32_6 = arith.constant 1 : i32
    scf.for %arg14 = %c0_i32_4 to %3 step %c1_i32_6  : i32 {
      %46 = arith.addi %1, %arg14 : i32
      %c1 = arith.constant 1 : index
      %47 = arith.index_cast %46 : i32 to index
      %48 = memref.load %arg1[%c1, %47] : memref<6x128xi32, #tpu.memory_space<smem>>
      %c0_i32_70 = arith.constant 0 : i32
      %49 = tpu.memref_slice %arg3[%48, %c0_i32_70] : memref<16x128xf32, #tpu.memory_space<any>> -> memref<1x128xf32, #tpu.memory_space<any>>
      %50 = tpu.memref_squeeze %49 : memref<1x128xf32, #tpu.memory_space<any>> -> memref<128xf32, #tpu.memory_space<any>>
      %c0_i32_71 = arith.constant 0 : i32
      %51 = tpu.memref_slice %arg8[%arg14, %c0_i32_71] : memref<128x128xf32, #tpu.memory_space<vmem>> -> memref<1x128xf32, #tpu.memory_space<vmem>>
      %52 = tpu.memref_squeeze %51 : memref<1x128xf32, #tpu.memory_space<vmem>> -> memref<128xf32, #tpu.memory_space<vmem>>
      %53 = tpu.memref_slice %arg13[%c1_i32_3] : memref<6x!tpu.dma_semaphore, #tpu.memory_space<semaphore_mem>> -> memref<1x!tpu.dma_semaphore, #tpu.memory_space<semaphore_mem>>
      %54 = tpu.memref_squeeze %53 : memref<1x!tpu.dma_semaphore, #tpu.memory_space<semaphore_mem>> -> memref<!tpu.dma_semaphore, #tpu.memory_space<semaphore_mem>>
      tpu.enqueue_dma source(%50 : memref<128xf32, #tpu.memory_space<any>>) target(%52 : memref<128xf32, #tpu.memory_space<vmem>>) target_semaphore(%54 : memref<!tpu.dma_semaphore, #tpu.memory_space<semaphore_mem>>)
    }
    %c128_i32_7 = arith.constant 128 : i32
    %c2_i32 = arith.constant 2 : i32
    %c0_i32_8 = arith.constant 0 : i32
    %c128_i32_9 = arith.constant 128 : i32
    %4 = arith.addi %c0_i32_8, %c128_i32_9 : i32
    %c1_i32_10 = arith.constant 1 : i32
    scf.for %arg14 = %c0_i32_8 to %4 step %c1_i32_10  : i32 {
      %46 = arith.addi %1, %arg14 : i32
      %c2 = arith.constant 2 : index
      %47 = arith.index_cast %46 : i32 to index
      %48 = memref.load %arg1[%c2, %47] : memref<6x128xi32, #tpu.memory_space<smem>>
      %c0_i32_70 = arith.constant 0 : i32
      %49 = tpu.memref_slice %arg2[%48, %c0_i32_70] : memref<64x128xf32, #tpu.memory_space<any>> -> memref<1x128xf32, #tpu.memory_space<any>>
      %50 = tpu.memref_squeeze %49 : memref<1x128xf32, #tpu.memory_space<any>> -> memref<128xf32, #tpu.memory_space<any>>
      %c0_i32_71 = arith.constant 0 : i32
      %51 = tpu.memref_slice %arg9[%arg14, %c0_i32_71] : memref<128x128xf32, #tpu.memory_space<vmem>> -> memref<1x128xf32, #tpu.memory_space<vmem>>
      %52 = tpu.memref_squeeze %51 : memref<1x128xf32, #tpu.memory_space<vmem>> -> memref<128xf32, #tpu.memory_space<vmem>>
      %53 = tpu.memref_slice %arg13[%c2_i32] : memref<6x!tpu.dma_semaphore, #tpu.memory_space<semaphore_mem>> -> memref<1x!tpu.dma_semaphore, #tpu.memory_space<semaphore_mem>>
      %54 = tpu.memref_squeeze %53 : memref<1x!tpu.dma_semaphore, #tpu.memory_space<semaphore_mem>> -> memref<!tpu.dma_semaphore, #tpu.memory_space<semaphore_mem>>
      tpu.enqueue_dma source(%50 : memref<128xf32, #tpu.memory_space<any>>) target(%52 : memref<128xf32, #tpu.memory_space<vmem>>) target_semaphore(%54 : memref<!tpu.dma_semaphore, #tpu.memory_space<semaphore_mem>>)
    }
    %c128_i32_11 = arith.constant 128 : i32
    %c3_i32 = arith.constant 3 : i32
    %c0_i32_12 = arith.constant 0 : i32
    %c128_i32_13 = arith.constant 128 : i32
    %5 = arith.addi %c0_i32_12, %c128_i32_13 : i32
    %c1_i32_14 = arith.constant 1 : i32
    scf.for %arg14 = %c0_i32_12 to %5 step %c1_i32_14  : i32 {
      %46 = arith.addi %1, %arg14 : i32
      %c3 = arith.constant 3 : index
      %47 = arith.index_cast %46 : i32 to index
      %48 = memref.load %arg1[%c3, %47] : memref<6x128xi32, #tpu.memory_space<smem>>
      %c0_i32_70 = arith.constant 0 : i32
      %49 = tpu.memref_slice %arg2[%48, %c0_i32_70] : memref<64x128xf32, #tpu.memory_space<any>> -> memref<1x128xf32, #tpu.memory_space<any>>
      %50 = tpu.memref_squeeze %49 : memref<1x128xf32, #tpu.memory_space<any>> -> memref<128xf32, #tpu.memory_space<any>>
      %c0_i32_71 = arith.constant 0 : i32
      %51 = tpu.memref_slice %arg10[%arg14, %c0_i32_71] : memref<128x128xf32, #tpu.memory_space<vmem>> -> memref<1x128xf32, #tpu.memory_space<vmem>>
      %52 = tpu.memref_squeeze %51 : memref<1x128xf32, #tpu.memory_space<vmem>> -> memref<128xf32, #tpu.memory_space<vmem>>
      %53 = tpu.memref_slice %arg13[%c3_i32] : memref<6x!tpu.dma_semaphore, #tpu.memory_space<semaphore_mem>> -> memref<1x!tpu.dma_semaphore, #tpu.memory_space<semaphore_mem>>
      %54 = tpu.memref_squeeze %53 : memref<1x!tpu.dma_semaphore, #tpu.memory_space<semaphore_mem>> -> memref<!tpu.dma_semaphore, #tpu.memory_space<semaphore_mem>>
      tpu.enqueue_dma source(%50 : memref<128xf32, #tpu.memory_space<any>>) target(%52 : memref<128xf32, #tpu.memory_space<vmem>>) target_semaphore(%54 : memref<!tpu.dma_semaphore, #tpu.memory_space<semaphore_mem>>)
    }
    %c128_i32_15 = arith.constant 128 : i32
    %c4_i32 = arith.constant 4 : i32
    %c0_i32_16 = arith.constant 0 : i32
    %c128_i32_17 = arith.constant 128 : i32
    %6 = arith.addi %c0_i32_16, %c128_i32_17 : i32
    %c1_i32_18 = arith.constant 1 : i32
    scf.for %arg14 = %c0_i32_16 to %6 step %c1_i32_18  : i32 {
      %46 = arith.addi %1, %arg14 : i32
      %c4 = arith.constant 4 : index
      %47 = arith.index_cast %46 : i32 to index
      %48 = memref.load %arg1[%c4, %47] : memref<6x128xi32, #tpu.memory_space<smem>>
      %c0_i32_70 = arith.constant 0 : i32
      %49 = tpu.memref_slice %arg3[%48, %c0_i32_70] : memref<16x128xf32, #tpu.memory_space<any>> -> memref<1x128xf32, #tpu.memory_space<any>>
      %50 = tpu.memref_squeeze %49 : memref<1x128xf32, #tpu.memory_space<any>> -> memref<128xf32, #tpu.memory_space<any>>
      %c0_i32_71 = arith.constant 0 : i32
      %51 = tpu.memref_slice %arg11[%arg14, %c0_i32_71] : memref<128x128xf32, #tpu.memory_space<vmem>> -> memref<1x128xf32, #tpu.memory_space<vmem>>
      %52 = tpu.memref_squeeze %51 : memref<1x128xf32, #tpu.memory_space<vmem>> -> memref<128xf32, #tpu.memory_space<vmem>>
      %53 = tpu.memref_slice %arg13[%c4_i32] : memref<6x!tpu.dma_semaphore, #tpu.memory_space<semaphore_mem>> -> memref<1x!tpu.dma_semaphore, #tpu.memory_space<semaphore_mem>>
      %54 = tpu.memref_squeeze %53 : memref<1x!tpu.dma_semaphore, #tpu.memory_space<semaphore_mem>> -> memref<!tpu.dma_semaphore, #tpu.memory_space<semaphore_mem>>
      tpu.enqueue_dma source(%50 : memref<128xf32, #tpu.memory_space<any>>) target(%52 : memref<128xf32, #tpu.memory_space<vmem>>) target_semaphore(%54 : memref<!tpu.dma_semaphore, #tpu.memory_space<semaphore_mem>>)
    }
    %c128_i32_19 = arith.constant 128 : i32
    %c5_i32 = arith.constant 5 : i32
    %c0_i32_20 = arith.constant 0 : i32
    %c128_i32_21 = arith.constant 128 : i32
    %7 = arith.addi %c0_i32_20, %c128_i32_21 : i32
    %c1_i32_22 = arith.constant 1 : i32
    scf.for %arg14 = %c0_i32_20 to %7 step %c1_i32_22  : i32 {
      %46 = arith.addi %1, %arg14 : i32
      %c5 = arith.constant 5 : index
      %47 = arith.index_cast %46 : i32 to index
      %48 = memref.load %arg1[%c5, %47] : memref<6x128xi32, #tpu.memory_space<smem>>
      %c0_i32_70 = arith.constant 0 : i32
      %49 = tpu.memref_slice %arg2[%48, %c0_i32_70] : memref<64x128xf32, #tpu.memory_space<any>> -> memref<1x128xf32, #tpu.memory_space<any>>
      %50 = tpu.memref_squeeze %49 : memref<1x128xf32, #tpu.memory_space<any>> -> memref<128xf32, #tpu.memory_space<any>>
      %c0_i32_71 = arith.constant 0 : i32
      %51 = tpu.memref_slice %arg12[%arg14, %c0_i32_71] : memref<128x128xf32, #tpu.memory_space<vmem>> -> memref<1x128xf32, #tpu.memory_space<vmem>>
      %52 = tpu.memref_squeeze %51 : memref<1x128xf32, #tpu.memory_space<vmem>> -> memref<128xf32, #tpu.memory_space<vmem>>
      %53 = tpu.memref_slice %arg13[%c5_i32] : memref<6x!tpu.dma_semaphore, #tpu.memory_space<semaphore_mem>> -> memref<1x!tpu.dma_semaphore, #tpu.memory_space<semaphore_mem>>
      %54 = tpu.memref_squeeze %53 : memref<1x!tpu.dma_semaphore, #tpu.memory_space<semaphore_mem>> -> memref<!tpu.dma_semaphore, #tpu.memory_space<semaphore_mem>>
      tpu.enqueue_dma source(%50 : memref<128xf32, #tpu.memory_space<any>>) target(%52 : memref<128xf32, #tpu.memory_space<vmem>>) target_semaphore(%54 : memref<!tpu.dma_semaphore, #tpu.memory_space<semaphore_mem>>)
    }
    %c128_i32_23 = arith.constant 128 : i32
    %c0_i32_24 = arith.constant 0 : i32
    %c0_i32_25 = arith.constant 0 : i32
    %c128_i32_26 = arith.constant 128 : i32
    %8 = arith.addi %c0_i32_25, %c128_i32_26 : i32
    %c1_i32_27 = arith.constant 1 : i32
    scf.for %arg14 = %c0_i32_25 to %8 step %c1_i32_27  : i32 {
      %c0_i32_70 = arith.constant 0 : i32
      %c0_i32_71 = arith.constant 0 : i32
      %c0_i32_72 = arith.constant 0 : i32
      %46 = tpu.memref_slice %arg2[%c0_i32_70, %c0_i32_72] : memref<64x128xf32, #tpu.memory_space<any>> -> memref<1x128xf32, #tpu.memory_space<any>>
      %47 = tpu.memref_squeeze %46 : memref<1x128xf32, #tpu.memory_space<any>> -> memref<128xf32, #tpu.memory_space<any>>
      %c0_i32_73 = arith.constant 0 : i32
      %48 = tpu.memref_slice %arg7[%c0_i32_71, %c0_i32_73] : memref<128x128xf32, #tpu.memory_space<vmem>> -> memref<1x128xf32, #tpu.memory_space<vmem>>
      %49 = tpu.memref_squeeze %48 : memref<1x128xf32, #tpu.memory_space<vmem>> -> memref<128xf32, #tpu.memory_space<vmem>>
      %50 = tpu.memref_slice %arg13[%c0_i32_24] : memref<6x!tpu.dma_semaphore, #tpu.memory_space<semaphore_mem>> -> memref<1x!tpu.dma_semaphore, #tpu.memory_space<semaphore_mem>>
      %51 = tpu.memref_squeeze %50 : memref<1x!tpu.dma_semaphore, #tpu.memory_space<semaphore_mem>> -> memref<!tpu.dma_semaphore, #tpu.memory_space<semaphore_mem>>
      tpu.wait_dma2 semaphore(%51 : memref<!tpu.dma_semaphore, #tpu.memory_space<semaphore_mem>>) src(%47 : memref<128xf32, #tpu.memory_space<any>>) dst(%49 : memref<128xf32, #tpu.memory_space<vmem>>)
    }
    %c1_i32_28 = arith.constant 1 : i32
    %c0_i32_29 = arith.constant 0 : i32
    %c128_i32_30 = arith.constant 128 : i32
    %9 = arith.addi %c0_i32_29, %c128_i32_30 : i32
    %c1_i32_31 = arith.constant 1 : i32
    scf.for %arg14 = %c0_i32_29 to %9 step %c1_i32_31  : i32 {
      %c0_i32_70 = arith.constant 0 : i32
      %c0_i32_71 = arith.constant 0 : i32
      %c0_i32_72 = arith.constant 0 : i32
      %46 = tpu.memref_slice %arg3[%c0_i32_70, %c0_i32_72] : memref<16x128xf32, #tpu.memory_space<any>> -> memref<1x128xf32, #tpu.memory_space<any>>
      %47 = tpu.memref_squeeze %46 : memref<1x128xf32, #tpu.memory_space<any>> -> memref<128xf32, #tpu.memory_space<any>>
      %c0_i32_73 = arith.constant 0 : i32
      %48 = tpu.memref_slice %arg8[%c0_i32_71, %c0_i32_73] : memref<128x128xf32, #tpu.memory_space<vmem>> -> memref<1x128xf32, #tpu.memory_space<vmem>>
      %49 = tpu.memref_squeeze %48 : memref<1x128xf32, #tpu.memory_space<vmem>> -> memref<128xf32, #tpu.memory_space<vmem>>
      %50 = tpu.memref_slice %arg13[%c1_i32_28] : memref<6x!tpu.dma_semaphore, #tpu.memory_space<semaphore_mem>> -> memref<1x!tpu.dma_semaphore, #tpu.memory_space<semaphore_mem>>
      %51 = tpu.memref_squeeze %50 : memref<1x!tpu.dma_semaphore, #tpu.memory_space<semaphore_mem>> -> memref<!tpu.dma_semaphore, #tpu.memory_space<semaphore_mem>>
      tpu.wait_dma2 semaphore(%51 : memref<!tpu.dma_semaphore, #tpu.memory_space<semaphore_mem>>) src(%47 : memref<128xf32, #tpu.memory_space<any>>) dst(%49 : memref<128xf32, #tpu.memory_space<vmem>>)
    }
    %c2_i32_32 = arith.constant 2 : i32
    %c0_i32_33 = arith.constant 0 : i32
    %c128_i32_34 = arith.constant 128 : i32
    %10 = arith.addi %c0_i32_33, %c128_i32_34 : i32
    %c1_i32_35 = arith.constant 1 : i32
    scf.for %arg14 = %c0_i32_33 to %10 step %c1_i32_35  : i32 {
      %c0_i32_70 = arith.constant 0 : i32
      %c0_i32_71 = arith.constant 0 : i32
      %c0_i32_72 = arith.constant 0 : i32
      %46 = tpu.memref_slice %arg2[%c0_i32_70, %c0_i32_72] : memref<64x128xf32, #tpu.memory_space<any>> -> memref<1x128xf32, #tpu.memory_space<any>>
      %47 = tpu.memref_squeeze %46 : memref<1x128xf32, #tpu.memory_space<any>> -> memref<128xf32, #tpu.memory_space<any>>
      %c0_i32_73 = arith.constant 0 : i32
      %48 = tpu.memref_slice %arg9[%c0_i32_71, %c0_i32_73] : memref<128x128xf32, #tpu.memory_space<vmem>> -> memref<1x128xf32, #tpu.memory_space<vmem>>
      %49 = tpu.memref_squeeze %48 : memref<1x128xf32, #tpu.memory_space<vmem>> -> memref<128xf32, #tpu.memory_space<vmem>>
      %50 = tpu.memref_slice %arg13[%c2_i32_32] : memref<6x!tpu.dma_semaphore, #tpu.memory_space<semaphore_mem>> -> memref<1x!tpu.dma_semaphore, #tpu.memory_space<semaphore_mem>>
      %51 = tpu.memref_squeeze %50 : memref<1x!tpu.dma_semaphore, #tpu.memory_space<semaphore_mem>> -> memref<!tpu.dma_semaphore, #tpu.memory_space<semaphore_mem>>
      tpu.wait_dma2 semaphore(%51 : memref<!tpu.dma_semaphore, #tpu.memory_space<semaphore_mem>>) src(%47 : memref<128xf32, #tpu.memory_space<any>>) dst(%49 : memref<128xf32, #tpu.memory_space<vmem>>)
    }
    %c3_i32_36 = arith.constant 3 : i32
    %c0_i32_37 = arith.constant 0 : i32
    %c128_i32_38 = arith.constant 128 : i32
    %11 = arith.addi %c0_i32_37, %c128_i32_38 : i32
    %c1_i32_39 = arith.constant 1 : i32
    scf.for %arg14 = %c0_i32_37 to %11 step %c1_i32_39  : i32 {
      %c0_i32_70 = arith.constant 0 : i32
      %c0_i32_71 = arith.constant 0 : i32
      %c0_i32_72 = arith.constant 0 : i32
      %46 = tpu.memref_slice %arg2[%c0_i32_70, %c0_i32_72] : memref<64x128xf32, #tpu.memory_space<any>> -> memref<1x128xf32, #tpu.memory_space<any>>
      %47 = tpu.memref_squeeze %46 : memref<1x128xf32, #tpu.memory_space<any>> -> memref<128xf32, #tpu.memory_space<any>>
      %c0_i32_73 = arith.constant 0 : i32
      %48 = tpu.memref_slice %arg10[%c0_i32_71, %c0_i32_73] : memref<128x128xf32, #tpu.memory_space<vmem>> -> memref<1x128xf32, #tpu.memory_space<vmem>>
      %49 = tpu.memref_squeeze %48 : memref<1x128xf32, #tpu.memory_space<vmem>> -> memref<128xf32, #tpu.memory_space<vmem>>
      %50 = tpu.memref_slice %arg13[%c3_i32_36] : memref<6x!tpu.dma_semaphore, #tpu.memory_space<semaphore_mem>> -> memref<1x!tpu.dma_semaphore, #tpu.memory_space<semaphore_mem>>
      %51 = tpu.memref_squeeze %50 : memref<1x!tpu.dma_semaphore, #tpu.memory_space<semaphore_mem>> -> memref<!tpu.dma_semaphore, #tpu.memory_space<semaphore_mem>>
      tpu.wait_dma2 semaphore(%51 : memref<!tpu.dma_semaphore, #tpu.memory_space<semaphore_mem>>) src(%47 : memref<128xf32, #tpu.memory_space<any>>) dst(%49 : memref<128xf32, #tpu.memory_space<vmem>>)
    }
    %c4_i32_40 = arith.constant 4 : i32
    %c0_i32_41 = arith.constant 0 : i32
    %c128_i32_42 = arith.constant 128 : i32
    %12 = arith.addi %c0_i32_41, %c128_i32_42 : i32
    %c1_i32_43 = arith.constant 1 : i32
    scf.for %arg14 = %c0_i32_41 to %12 step %c1_i32_43  : i32 {
      %c0_i32_70 = arith.constant 0 : i32
      %c0_i32_71 = arith.constant 0 : i32
      %c0_i32_72 = arith.constant 0 : i32
      %46 = tpu.memref_slice %arg3[%c0_i32_70, %c0_i32_72] : memref<16x128xf32, #tpu.memory_space<any>> -> memref<1x128xf32, #tpu.memory_space<any>>
      %47 = tpu.memref_squeeze %46 : memref<1x128xf32, #tpu.memory_space<any>> -> memref<128xf32, #tpu.memory_space<any>>
      %c0_i32_73 = arith.constant 0 : i32
      %48 = tpu.memref_slice %arg11[%c0_i32_71, %c0_i32_73] : memref<128x128xf32, #tpu.memory_space<vmem>> -> memref<1x128xf32, #tpu.memory_space<vmem>>
      %49 = tpu.memref_squeeze %48 : memref<1x128xf32, #tpu.memory_space<vmem>> -> memref<128xf32, #tpu.memory_space<vmem>>
      %50 = tpu.memref_slice %arg13[%c4_i32_40] : memref<6x!tpu.dma_semaphore, #tpu.memory_space<semaphore_mem>> -> memref<1x!tpu.dma_semaphore, #tpu.memory_space<semaphore_mem>>
      %51 = tpu.memref_squeeze %50 : memref<1x!tpu.dma_semaphore, #tpu.memory_space<semaphore_mem>> -> memref<!tpu.dma_semaphore, #tpu.memory_space<semaphore_mem>>
      tpu.wait_dma2 semaphore(%51 : memref<!tpu.dma_semaphore, #tpu.memory_space<semaphore_mem>>) src(%47 : memref<128xf32, #tpu.memory_space<any>>) dst(%49 : memref<128xf32, #tpu.memory_space<vmem>>)
    }
    %c5_i32_44 = arith.constant 5 : i32
    %c0_i32_45 = arith.constant 0 : i32
    %c128_i32_46 = arith.constant 128 : i32
    %13 = arith.addi %c0_i32_45, %c128_i32_46 : i32
    %c1_i32_47 = arith.constant 1 : i32
    scf.for %arg14 = %c0_i32_45 to %13 step %c1_i32_47  : i32 {
      %c0_i32_70 = arith.constant 0 : i32
      %c0_i32_71 = arith.constant 0 : i32
      %c0_i32_72 = arith.constant 0 : i32
      %46 = tpu.memref_slice %arg2[%c0_i32_70, %c0_i32_72] : memref<64x128xf32, #tpu.memory_space<any>> -> memref<1x128xf32, #tpu.memory_space<any>>
      %47 = tpu.memref_squeeze %46 : memref<1x128xf32, #tpu.memory_space<any>> -> memref<128xf32, #tpu.memory_space<any>>
      %c0_i32_73 = arith.constant 0 : i32
      %48 = tpu.memref_slice %arg12[%c0_i32_71, %c0_i32_73] : memref<128x128xf32, #tpu.memory_space<vmem>> -> memref<1x128xf32, #tpu.memory_space<vmem>>
      %49 = tpu.memref_squeeze %48 : memref<1x128xf32, #tpu.memory_space<vmem>> -> memref<128xf32, #tpu.memory_space<vmem>>
      %50 = tpu.memref_slice %arg13[%c5_i32_44] : memref<6x!tpu.dma_semaphore, #tpu.memory_space<semaphore_mem>> -> memref<1x!tpu.dma_semaphore, #tpu.memory_space<semaphore_mem>>
      %51 = tpu.memref_squeeze %50 : memref<1x!tpu.dma_semaphore, #tpu.memory_space<semaphore_mem>> -> memref<!tpu.dma_semaphore, #tpu.memory_space<semaphore_mem>>
      tpu.wait_dma2 semaphore(%51 : memref<!tpu.dma_semaphore, #tpu.memory_space<semaphore_mem>>) src(%47 : memref<128xf32, #tpu.memory_space<any>>) dst(%49 : memref<128xf32, #tpu.memory_space<vmem>>)
    }
    %c0 = arith.constant 0 : index
    %c0_48 = arith.constant 0 : index
    %14 = vector.load %arg7[%c0, %c0_48] : memref<128x128xf32, #tpu.memory_space<vmem>>, vector<128x128xf32>
    %c0_49 = arith.constant 0 : index
    %c0_50 = arith.constant 0 : index
    %15 = vector.load %arg8[%c0_49, %c0_50] : memref<128x128xf32, #tpu.memory_space<vmem>>, vector<128x128xf32>
    %16 = arith.addf %14, %15 : vector<128x128xf32>
    %c0_51 = arith.constant 0 : index
    %c0_52 = arith.constant 0 : index
    %17 = vector.load %arg9[%c0_51, %c0_52] : memref<128x128xf32, #tpu.memory_space<vmem>>, vector<128x128xf32>
    %18 = arith.subf %16, %17 : vector<128x128xf32>
    %c0_53 = arith.constant 0 : index
    %c0_54 = arith.constant 0 : index
    %19 = vector.load %arg10[%c0_53, %c0_54] : memref<128x128xf32, #tpu.memory_space<vmem>>, vector<128x128xf32>
    %c0_55 = arith.constant 0 : index
    %c0_56 = arith.constant 0 : index
    %20 = vector.load %arg11[%c0_55, %c0_56] : memref<128x128xf32, #tpu.memory_space<vmem>>, vector<128x128xf32>
    %21 = arith.addf %19, %20 : vector<128x128xf32>
    %c0_57 = arith.constant 0 : index
    %c0_58 = arith.constant 0 : index
    %22 = vector.load %arg12[%c0_57, %c0_58] : memref<128x128xf32, #tpu.memory_space<vmem>>, vector<128x128xf32>
    %23 = arith.subf %21, %22 : vector<128x128xf32>
    %24 = arith.mulf %18, %18 : vector<128x128xf32>
    %25 = arith.mulf %23, %23 : vector<128x128xf32>
    %cst = arith.constant 1.000000e+00 : f32
    %26 = vector.broadcast %cst : f32 to vector<1x128xf32>
    %cst_59 = arith.constant dense<0.000000e+00> : vector<1x128xf32>
    %27 = tpu.matmul %26, %24, %cst_59 {dimension_numbers = #tpu.dot_dimension_numbers<[1], [1], [0], [0], [0, 0, 1, 0], [], []>, precision = #tpu.contract_precision<fp32>} : vector<1x128xf32>, vector<128x128xf32>, vector<1x128xf32> -> vector<1x128xf32>
    %cst_60 = arith.constant dense<0.000000e+00> : vector<1x128xf32>
    %28 = tpu.matmul %26, %25, %cst_60 {dimension_numbers = #tpu.dot_dimension_numbers<[1], [1], [0], [0], [0, 0, 1, 0], [], []>, precision = #tpu.contract_precision<fp32>} : vector<1x128xf32>, vector<128x128xf32>, vector<1x128xf32> -> vector<1x128xf32>
    %29 = math.sqrt %27 : vector<1x128xf32>
    %30 = math.sqrt %28 : vector<1x128xf32>
    %c0_61 = arith.constant 0 : index
    %c0_62 = arith.constant 0 : index
    %31 = vector.load %arg4[%c0_61, %c0_62] : memref<1x128xf32, #tpu.memory_space<vmem>>, vector<1x128xf32>
    tpu.vector_store %arg4[%c0_61, %c0_62], %29 {strides = array<i32>} : memref<1x128xf32, #tpu.memory_space<vmem>>, vector<1x128xf32>,
    %c0_63 = arith.constant 0 : index
    %c0_64 = arith.constant 0 : index
    %32 = vector.load %arg5[%c0_63, %c0_64] : memref<1x128xf32, #tpu.memory_space<vmem>>, vector<1x128xf32>
    tpu.vector_store %arg5[%c0_63, %c0_64], %30 {strides = array<i32>} : memref<1x128xf32, #tpu.memory_space<vmem>>, vector<1x128xf32>,
    %33 = tpu.iota {dimensions = array<i32: 1>} : vector<1x128xi32>
    %34 = vector.broadcast %1 : i32 to vector<1x128xi32>
    %35 = arith.addi %34, %33 : vector<1x128xi32>
    %c8_i32 = arith.constant 8 : i32
    %36 = vector.broadcast %c8_i32 : i32 to vector<1x128xi32>
    %37 = arith.cmpi slt, %35, %36 : vector<1x128xi32>
    %38 = arith.subf %29, %30 : vector<1x128xf32>
    %cst_65 = arith.constant 1.000000e+00 : f32
    %39 = vector.broadcast %cst_65 : f32 to vector<1x128xf32>
    %40 = arith.addf %38, %39 : vector<1x128xf32>
    %cst_66 = arith.constant 0.000000e+00 : f32
    %41 = vector.broadcast %cst_66 : f32 to vector<1x128xf32>
    %42 = arith.maximumf %40, %41 : vector<1x128xf32>
    %cst_67 = arith.constant 0.000000e+00 : f32
    %43 = vector.broadcast %cst_67 : f32 to vector<1x128xf32>
    %44 = arith.select %37, %42, %43 : vector<1x128xi1>, vector<1x128xf32>
    %c0_68 = arith.constant 0 : index
    %c0_69 = arith.constant 0 : index
    %45 = vector.load %arg6[%c0_68, %c0_69] : memref<1x128xf32, #tpu.memory_space<vmem>>, vector<1x128xf32>
    tpu.vector_store %arg6[%c0_68, %c0_69], %44 {strides = array<i32>} : memref<1x128xf32, #tpu.memory_space<vmem>>, vector<1x128xf32>,
    return
  }
  func.func @transform_2(%arg0: i32, %arg1: memref<6x128xi32, #tpu.memory_space<smem>>) -> (i32, i32) {
    %c0_i32 = arith.constant 0 : i32
    %c0_i32_0 = arith.constant 0 : i32
    return %c0_i32, %arg0 : i32, i32
  }
  func.func @transform_3(%arg0: i32, %arg1: memref<6x128xi32, #tpu.memory_space<smem>>) -> (i32, i32) {
    %c0_i32 = arith.constant 0 : i32
    %c0_i32_0 = arith.constant 0 : i32
    return %c0_i32, %arg0 : i32, i32
  }
  func.func @transform_4(%arg0: i32, %arg1: memref<6x128xi32, #tpu.memory_space<smem>>) -> (i32, i32) {
    %c0_i32 = arith.constant 0 : i32
    %c0_i32_0 = arith.constant 0 : i32
    return %c0_i32, %arg0 : i32, i32
  }
}

</mosaic_0001>

<llo_original>
// kernel: transe_forward.1
$region0: #{transe_forward.1}
  #allocation0 [shape = 'u32[]', space=smem, size = 0x4, offset = 0x4, fixed_abs, tag = 'smem constant byte address 0x4 - core index']
  #allocation1 [shape = 'u32[144,128]{1,0:T(1,128)}', space=vmem, size = 0x12000, scoped, tag = 'internal scratch']
  #allocation2 [shape = 'f32[128,128]{1,0:T(8,128)}', space=vmem, size = 0x10000, scoped, tag = 'scratch operand']
  #allocation3 [shape = 'f32[128,128]{1,0:T(8,128)}', space=vmem, size = 0x10000, scoped, tag = 'scratch operand']
  #allocation4 [shape = 'f32[128,128]{1,0:T(8,128)}', space=vmem, size = 0x10000, scoped, tag = 'scratch operand']
  #allocation5 [shape = 'f32[128,128]{1,0:T(8,128)}', space=vmem, size = 0x10000, scoped, tag = 'scratch operand']
  #allocation6 [shape = 'f32[128,128]{1,0:T(8,128)}', space=vmem, size = 0x10000, scoped, tag = 'scratch operand']
  #allocation7 [shape = 'f32[128,128]{1,0:T(8,128)}', space=vmem, size = 0x10000, scoped, tag = 'scratch operand']
  #allocation8 [shape = 's32[6]{0}', space=sflag, size = 0x18, scoped, tag = 'scratch operand']
  #allocation9 [shape = 's32[1]{0}', space=sflag, size = 0x4, scoped, tag = 'scoped memory for transe_forward.1']
  #allocation10 [shape = 'u8[4096]{0}', space=smem, size = 0x1000, scoped, tag = 'prefetched SMEM operand 0']
  #allocation11 [shape = 's32[]', space=sflag, size = 0x4, offset = 0, fixed_abs, tag = 'sflag constant byte address 0x0 - dummy sync flag']
  #allocation12 [shape = 's32[]', space=sflag, size = 0x4, offset = 0, fixed_abs, tag = 'sflag constant byte address 0x0 - dummy sync flag']
  #allocation13 [shape = 's32[]', space=sflag, size = 0x4, offset = 0, fixed_abs, tag = 'sflag constant byte address 0x0 - dummy sync flag']
  #allocation14 [shape = 's32[]', space=sflag, size = 0x4, offset = 0, fixed_abs, tag = 'sflag constant byte address 0x0 - dummy sync flag']
  #allocation15 [shape = 's32[]', space=sflag, size = 0x4, offset = 0, fixed_abs, tag = 'sflag constant byte address 0x0 - dummy sync flag']
  #allocation16 [shape = 's32[]', space=sflag, size = 0x4, offset = 0, fixed_abs, tag = 'sflag constant byte address 0x0 - dummy sync flag']
  %s0 = inlined_call_operand.vmem [shape: s32[6,128], index: 0, kind: input, shape index: {}]
  %s1 = inlined_call_operand.vmem [shape: f32[64,128], index: 1, kind: input, shape index: {}]
  %s2 = inlined_call_operand.vmem [shape: f32[16,128], index: 2, kind: input, shape index: {}]
  %s3 = inlined_call_operand.vmem [shape: f32[1,128], index: 3, kind: output, shape index: {0}]
  %s4 = inlined_call_operand.vmem [shape: f32[1,128], index: 4, kind: output, shape index: {1}]
  %s5 = inlined_call_operand.vmem [shape: f32[1,128], index: 5, kind: output, shape index: {2}]
  %6 = xla_tuple %s3, %s4, %s5
  %s7 = sld [smem:[#allocation0]]
  $region290: #{transe_forward.1} parent=0
    _
  %s9 = ssub.s32 1, %s7
  %s10 = scalar_select 0, %s9, %s7
  %s11 = sshll.u32 %s0, 4
  %s12 = int_to_ptr.vmem [resolvable:$true] %s11
  %14 = dma.vmem_to_smem %s12, 128, [#allocation10], [#allocation9]
  %15 = dma.done [#allocation9], 128
  %16 = sfence
  %s17 = smul.u32 0, 128
  loop: start=0, step=1, limit=128
  $region2: #{transe_forward.1} parent=0 // loop_pre_header
    _
  $region3: #{transe_forward.1} parent=0 // loop_header
    %s19 = sphi 0, %s23
    %p20 = scmp.ge.s32.totalorder %s19, 128
  $region4: #{transe_forward.1} parent=0 // loop_header_branch
    %22 = sbr.rel (%p20) target = $region8
  $region5: #{transe_forward.1} parent=0 // loop_body
    %s24 = sadd.s32 %s17, %s19
    %s25 = sld [smem:[#allocation10 + %s24]]
    %s26 = scalar_lea.vmem %s1, %s25
    %s27 = scalar_lea.vmem [#allocation2], %s19
    %p29 = scmp.lt.u32.totalorder 1, 8
    %p30 = pneg %p29
    // Predicated region
    $region9: #{transe_forward.1} parent=5 // pred_check
      _
    $region10: #{transe_forward.1} parent=5 // pred_check_branch
      %32 = sbr.rel (%p29) target = $region12
    $region11: #{transe_forward.1} parent=5 // pred_region
      %s47 = sand.u32 1, 7
      %p48 = scmp.eq.s32.totalorder %s47, 0
      %p49 = pneg %p48
      // Predicated region
      $region24: #{transe_forward.1} parent=11 // pred_check
        _
      $region25: #{transe_forward.1} parent=11 // pred_check_branch
        %51 = sbr.rel (%p48) target = $region27
      $region26: #{transe_forward.1} parent=11 // pred_region
        %s52 = sand.u32 1, 7
        %s53 = ssub.s32 1, %s52
        %s54 = scalar_lea.vmem %s26, %s53
        %s55 = ssub.s32 1, %s52
        %s56 = scalar_lea.vmem %s27, %s55 [#allocation2]
        %s57 = sshllo.u32 0, %s52
        loop: start=0, step=1, limit=1
        $region28: #{transe_forward.1} parent=26 // loop_pre_header
          _
        $region29: #{transe_forward.1} parent=26 // loop_header
          %s59 = sphi 0, %s63
          %p60 = scmp.ge.s32.totalorder %s59, 1
          %s64 = sphi %s54, %s54
          %s65 = sphi %s56, %s56
        $region30: #{transe_forward.1} parent=26 // loop_header_branch
          %62 = sbr.rel (%p60) target = $region34
        $region31: #{transe_forward.1} parent=26 // loop_body
          %v66 = vld [vmem:[%s64] sm:%s57]
          %67 = vst [vmem:[%s65] sm:%s57] %v66
        $region32: #{transe_forward.1} parent=26 // loop_footer
          %s63 = sadd.s32 1, %s59
        $region33: #{transe_forward.1} parent=26 // loop_footer_branch
          %58 = sbr.rel target = $region29
        $region34: #{transe_forward.1} parent=26 // loop_exit
          _
      $region27: #{transe_forward.1} parent=11 // pred_fallthru
        _
    $region12: #{transe_forward.1} parent=5 // pred_fallthru
      _
    // Predicated region
    $region13: #{transe_forward.1} parent=5 // pred_check
      %p33 = pneg %p29
    $region14: #{transe_forward.1} parent=5 // pred_check_branch
      %35 = sbr.rel (%p33) target = $region16
    $region15: #{transe_forward.1} parent=5 // pred_region
      %s36 = sshllo.u32 0, 1
      loop: start=0, step=1, limit=1
      $region17: #{transe_forward.1} parent=15 // loop_pre_header
        _
      $region18: #{transe_forward.1} parent=15 // loop_header
        %s38 = sphi 0, %s42
        %p39 = scmp.ge.s32.totalorder %s38, 1
        %s43 = sphi %s26, %s26
        %s44 = sphi %s27, %s27
      $region19: #{transe_forward.1} parent=15 // loop_header_branch
        %41 = sbr.rel (%p39) target = $region23
      $region20: #{transe_forward.1} parent=15 // loop_body
        %v45 = vld [vmem:[%s43] sm:%s36]
        %46 = vst [vmem:[%s44] sm:%s36] %v45
      $region21: #{transe_forward.1} parent=15 // loop_footer
        %s42 = sadd.s32 1, %s38
      $region22: #{transe_forward.1} parent=15 // loop_footer_branch
        %37 = sbr.rel target = $region18
      $region23: #{transe_forward.1} parent=15 // loop_exit
        _
    $region16: #{transe_forward.1} parent=5 // pred_fallthru
      _
    // Predicated region
    $region35: #{transe_forward.1} parent=5 // pred_check
      _
    $region36: #{transe_forward.1} parent=5 // pred_check_branch
      %70 = sbr.rel (0) target = $region38
    $region37: #{transe_forward.1} parent=5 // pred_region
      %71 = vsyncadd [#allocation8], 16
    $region38: #{transe_forward.1} parent=5 // pred_fallthru
      _
  $region6: #{transe_forward.1} parent=0 // loop_footer
    %s23 = sadd.s32 1, %s19
  $region7: #{transe_forward.1} parent=0 // loop_footer_branch
    %18 = sbr.rel target = $region3
  $region8: #{transe_forward.1} parent=0 // loop_exit
    _
  loop: start=0, step=1, limit=128
  $region39: #{transe_forward.1} parent=0 // loop_pre_header
    _
  $region40: #{transe_forward.1} parent=0 // loop_header
    %s73 = sphi 0, %s77
    %p74 = scmp.ge.s32.totalorder %s73, 128
  $region41: #{transe_forward.1} parent=0 // loop_header_branch
    %76 = sbr.rel (%p74) target = $region45
  $region42: #{transe_forward.1} parent=0 // loop_body
    %s78 = sadd.s32 %s17, %s73
    %s79 = sshra.s32 %s78, 7
    %s80 = sand.u32 %s78, 127
    %s81 = sadd.s32 %s79, 1
    %s82 = smul.u32 %s81, 128
    %s83 = sshra.s32 %s78, 7
    %s84 = sand.u32 %s78, 127
    %s85 = sadd.s32 %s82, %s84
    %s86 = sld [smem:[#allocation10 + %s85]]
    %s87 = scalar_lea.vmem %s2, %s86
    %s88 = scalar_lea.vmem [#allocation3], %s73
    %s89 = scalar_lea.sflag [#allocation8], 1
    %p91 = scmp.lt.u32.totalorder 1, 8
    %p92 = pneg %p91
    // Predicated region
    $region46: #{transe_forward.1} parent=42 // pred_check
      _
    $region47: #{transe_forward.1} parent=42 // pred_check_branch
      %94 = sbr.rel (%p91) target = $region49
    $region48: #{transe_forward.1} parent=42 // pred_region
      %s109 = sand.u32 1, 7
      %p110 = scmp.eq.s32.totalorder %s109, 0
      %p111 = pneg %p110
      // Predicated region
      $region61: #{transe_forward.1} parent=48 // pred_check
        _
      $region62: #{transe_forward.1} parent=48 // pred_check_branch
        %113 = sbr.rel (%p110) target = $region64
      $region63: #{transe_forward.1} parent=48 // pred_region
        %s114 = sand.u32 1, 7
        %s115 = ssub.s32 1, %s114
        %s116 = scalar_lea.vmem %s87, %s115
        %s117 = ssub.s32 1, %s114
        %s118 = scalar_lea.vmem %s88, %s117 [#allocation3]
        %s119 = sshllo.u32 0, %s114
        loop: start=0, step=1, limit=1
        $region65: #{transe_forward.1} parent=63 // loop_pre_header
          _
        $region66: #{transe_forward.1} parent=63 // loop_header
          %s121 = sphi 0, %s125
          %p122 = scmp.ge.s32.totalorder %s121, 1
          %s126 = sphi %s116, %s116
          %s127 = sphi %s118, %s118
        $region67: #{transe_forward.1} parent=63 // loop_header_branch
          %124 = sbr.rel (%p122) target = $region71
        $region68: #{transe_forward.1} parent=63 // loop_body
          %v128 = vld [vmem:[%s126] sm:%s119]
          %129 = vst [vmem:[%s127] sm:%s119] %v128
        $region69: #{transe_forward.1} parent=63 // loop_footer
          %s125 = sadd.s32 1, %s121
        $region70: #{transe_forward.1} parent=63 // loop_footer_branch
          %120 = sbr.rel target = $region66
        $region71: #{transe_forward.1} parent=63 // loop_exit
          _
      $region64: #{transe_forward.1} parent=48 // pred_fallthru
        _
    $region49: #{transe_forward.1} parent=42 // pred_fallthru
      _
    // Predicated region
    $region50: #{transe_forward.1} parent=42 // pred_check
      %p95 = pneg %p91
    $region51: #{transe_forward.1} parent=42 // pred_check_branch
      %97 = sbr.rel (%p95) target = $region53
    $region52: #{transe_forward.1} parent=42 // pred_region
      %s98 = sshllo.u32 0, 1
      loop: start=0, step=1, limit=1
      $region54: #{transe_forward.1} parent=52 // loop_pre_header
        _
      $region55: #{transe_forward.1} parent=52 // loop_header
        %s100 = sphi 0, %s104
        %p101 = scmp.ge.s32.totalorder %s100, 1
        %s105 = sphi %s87, %s87
        %s106 = sphi %s88, %s88
      $region56: #{transe_forward.1} parent=52 // loop_header_branch
        %103 = sbr.rel (%p101) target = $region60
      $region57: #{transe_forward.1} parent=52 // loop_body
        %v107 = vld [vmem:[%s105] sm:%s98]
        %108 = vst [vmem:[%s106] sm:%s98] %v107
      $region58: #{transe_forward.1} parent=52 // loop_footer
        %s104 = sadd.s32 1, %s100
      $region59: #{transe_forward.1} parent=52 // loop_footer_branch
        %99 = sbr.rel target = $region55
      $region60: #{transe_forward.1} parent=52 // loop_exit
        _
    $region53: #{transe_forward.1} parent=42 // pred_fallthru
      _
    // Predicated region
    $region72: #{transe_forward.1} parent=42 // pred_check
      _
    $region73: #{transe_forward.1} parent=42 // pred_check_branch
      %132 = sbr.rel (0) target = $region75
    $region74: #{transe_forward.1} parent=42 // pred_region
      %133 = vsyncadd %s89, 16
    $region75: #{transe_forward.1} parent=42 // pred_fallthru
      _
  $region43: #{transe_forward.1} parent=0 // loop_footer
    %s77 = sadd.s32 1, %s73
  $region44: #{transe_forward.1} parent=0 // loop_footer_branch
    %72 = sbr.rel target = $region40
  $region45: #{transe_forward.1} parent=0 // loop_exit
    _
  loop: start=0, step=1, limit=128
  $region76: #{transe_forward.1} parent=0 // loop_pre_header
    _
  $region77: #{transe_forward.1} parent=0 // loop_header
    %s135 = sphi 0, %s139
    %p136 = scmp.ge.s32.totalorder %s135, 128
  $region78: #{transe_forward.1} parent=0 // loop_header_branch
    %138 = sbr.rel (%p136) target = $region82
  $region79: #{transe_forward.1} parent=0 // loop_body
    %s140 = sadd.s32 %s17, %s135
    %s141 = sshra.s32 %s140, 7
    %s142 = sand.u32 %s140, 127
    %s143 = sadd.s32 %s141, 2
    %s144 = smul.u32 %s143, 128
    %s145 = sshra.s32 %s140, 7
    %s146 = sand.u32 %s140, 127
    %s147 = sadd.s32 %s144, %s146
    %s148 = sld [smem:[#allocation10 + %s147]]
    %s149 = scalar_lea.vmem %s1, %s148
    %s150 = scalar_lea.vmem [#allocation4], %s135
    %s151 = scalar_lea.sflag [#allocation8], 2
    %p153 = scmp.lt.u32.totalorder 1, 8
    %p154 = pneg %p153
    // Predicated region
    $region83: #{transe_forward.1} parent=79 // pred_check
      _
    $region84: #{transe_forward.1} parent=79 // pred_check_branch
      %156 = sbr.rel (%p153) target = $region86
    $region85: #{transe_forward.1} parent=79 // pred_region
      %s171 = sand.u32 1, 7
      %p172 = scmp.eq.s32.totalorder %s171, 0
      %p173 = pneg %p172
      // Predicated region
      $region98: #{transe_forward.1} parent=85 // pred_check
        _
      $region99: #{transe_forward.1} parent=85 // pred_check_branch
        %175 = sbr.rel (%p172) target = $region101
      $region100: #{transe_forward.1} parent=85 // pred_region
        %s176 = sand.u32 1, 7
        %s177 = ssub.s32 1, %s176
        %s178 = scalar_lea.vmem %s149, %s177
        %s179 = ssub.s32 1, %s176
        %s180 = scalar_lea.vmem %s150, %s179 [#allocation4]
        %s181 = sshllo.u32 0, %s176
        loop: start=0, step=1, limit=1
        $region102: #{transe_forward.1} parent=100 // loop_pre_header
          _
        $region103: #{transe_forward.1} parent=100 // loop_header
          %s183 = sphi 0, %s187
          %p184 = scmp.ge.s32.totalorder %s183, 1
          %s188 = sphi %s178, %s178
          %s189 = sphi %s180, %s180
        $region104: #{transe_forward.1} parent=100 // loop_header_branch
          %186 = sbr.rel (%p184) target = $region108
        $region105: #{transe_forward.1} parent=100 // loop_body
          %v190 = vld [vmem:[%s188] sm:%s181]
          %191 = vst [vmem:[%s189] sm:%s181] %v190
        $region106: #{transe_forward.1} parent=100 // loop_footer
          %s187 = sadd.s32 1, %s183
        $region107: #{transe_forward.1} parent=100 // loop_footer_branch
          %182 = sbr.rel target = $region103
        $region108: #{transe_forward.1} parent=100 // loop_exit
          _
      $region101: #{transe_forward.1} parent=85 // pred_fallthru
        _
    $region86: #{transe_forward.1} parent=79 // pred_fallthru
      _
    // Predicated region
    $region87: #{transe_forward.1} parent=79 // pred_check
      %p157 = pneg %p153
    $region88: #{transe_forward.1} parent=79 // pred_check_branch
      %159 = sbr.rel (%p157) target = $region90
    $region89: #{transe_forward.1} parent=79 // pred_region
      %s160 = sshllo.u32 0, 1
      loop: start=0, step=1, limit=1
      $region91: #{transe_forward.1} parent=89 // loop_pre_header
        _
      $region92: #{transe_forward.1} parent=89 // loop_header
        %s162 = sphi 0, %s166
        %p163 = scmp.ge.s32.totalorder %s162, 1
        %s167 = sphi %s149, %s149
        %s168 = sphi %s150, %s150
      $region93: #{transe_forward.1} parent=89 // loop_header_branch
        %165 = sbr.rel (%p163) target = $region97
      $region94: #{transe_forward.1} parent=89 // loop_body
        %v169 = vld [vmem:[%s167] sm:%s160]
        %170 = vst [vmem:[%s168] sm:%s160] %v169
      $region95: #{transe_forward.1} parent=89 // loop_footer
        %s166 = sadd.s32 1, %s162
      $region96: #{transe_forward.1} parent=89 // loop_footer_branch
        %161 = sbr.rel target = $region92
      $region97: #{transe_forward.1} parent=89 // loop_exit
        _
    $region90: #{transe_forward.1} parent=79 // pred_fallthru
      _
    // Predicated region
    $region109: #{transe_forward.1} parent=79 // pred_check
      _
    $region110: #{transe_forward.1} parent=79 // pred_check_branch
      %194 = sbr.rel (0) target = $region112
    $region111: #{transe_forward.1} parent=79 // pred_region
      %195 = vsyncadd %s151, 16
    $region112: #{transe_forward.1} parent=79 // pred_fallthru
      _
  $region80: #{transe_forward.1} parent=0 // loop_footer
    %s139 = sadd.s32 1, %s135
  $region81: #{transe_forward.1} parent=0 // loop_footer_branch
    %134 = sbr.rel target = $region77
  $region82: #{transe_forward.1} parent=0 // loop_exit
    _
  loop: start=0, step=1, limit=128
  $region113: #{transe_forward.1} parent=0 // loop_pre_header
    _
  $region114: #{transe_forward.1} parent=0 // loop_header
    %s197 = sphi 0, %s201
    %p198 = scmp.ge.s32.totalorder %s197, 128
  $region115: #{transe_forward.1} parent=0 // loop_header_branch
    %200 = sbr.rel (%p198) target = $region119
  $region116: #{transe_forward.1} parent=0 // loop_body
    %s202 = sadd.s32 %s17, %s197
    %s203 = sshra.s32 %s202, 7
    %s204 = sand.u32 %s202, 127
    %s205 = sadd.s32 %s203, 3
    %s206 = smul.u32 %s205, 128
    %s207 = sshra.s32 %s202, 7
    %s208 = sand.u32 %s202, 127
    %s209 = sadd.s32 %s206, %s208
    %s210 = sld [smem:[#allocation10 + %s209]]
    %s211 = scalar_lea.vmem %s1, %s210
    %s212 = scalar_lea.vmem [#allocation5], %s197
    %s213 = scalar_lea.sflag [#allocation8], 3
    %p215 = scmp.lt.u32.totalorder 1, 8
    %p216 = pneg %p215
    // Predicated region
    $region120: #{transe_forward.1} parent=116 // pred_check
      _
    $region121: #{transe_forward.1} parent=116 // pred_check_branch
      %218 = sbr.rel (%p215) target = $region123
    $region122: #{transe_forward.1} parent=116 // pred_region
      %s233 = sand.u32 1, 7
      %p234 = scmp.eq.s32.totalorder %s233, 0
      %p235 = pneg %p234
      // Predicated region
      $region135: #{transe_forward.1} parent=122 // pred_check
        _
      $region136: #{transe_forward.1} parent=122 // pred_check_branch
        %237 = sbr.rel (%p234) target = $region138
      $region137: #{transe_forward.1} parent=122 // pred_region
        %s238 = sand.u32 1, 7
        %s239 = ssub.s32 1, %s238
        %s240 = scalar_lea.vmem %s211, %s239
        %s241 = ssub.s32 1, %s238
        %s242 = scalar_lea.vmem %s212, %s241 [#allocation5]
        %s243 = sshllo.u32 0, %s238
        loop: start=0, step=1, limit=1
        $region139: #{transe_forward.1} parent=137 // loop_pre_header
          _
        $region140: #{transe_forward.1} parent=137 // loop_header
          %s245 = sphi 0, %s249
          %p246 = scmp.ge.s32.totalorder %s245, 1
          %s250 = sphi %s240, %s240
          %s251 = sphi %s242, %s242
        $region141: #{transe_forward.1} parent=137 // loop_header_branch
          %248 = sbr.rel (%p246) target = $region145
        $region142: #{transe_forward.1} parent=137 // loop_body
          %v252 = vld [vmem:[%s250] sm:%s243]
          %253 = vst [vmem:[%s251] sm:%s243] %v252
        $region143: #{transe_forward.1} parent=137 // loop_footer
          %s249 = sadd.s32 1, %s245
        $region144: #{transe_forward.1} parent=137 // loop_footer_branch
          %244 = sbr.rel target = $region140
        $region145: #{transe_forward.1} parent=137 // loop_exit
          _
      $region138: #{transe_forward.1} parent=122 // pred_fallthru
        _
    $region123: #{transe_forward.1} parent=116 // pred_fallthru
      _
    // Predicated region
    $region124: #{transe_forward.1} parent=116 // pred_check
      %p219 = pneg %p215
    $region125: #{transe_forward.1} parent=116 // pred_check_branch
      %221 = sbr.rel (%p219) target = $region127
    $region126: #{transe_forward.1} parent=116 // pred_region
      %s222 = sshllo.u32 0, 1
      loop: start=0, step=1, limit=1
      $region128: #{transe_forward.1} parent=126 // loop_pre_header
        _
      $region129: #{transe_forward.1} parent=126 // loop_header
        %s224 = sphi 0, %s228
        %p225 = scmp.ge.s32.totalorder %s224, 1
        %s229 = sphi %s211, %s211
        %s230 = sphi %s212, %s212
      $region130: #{transe_forward.1} parent=126 // loop_header_branch
        %227 = sbr.rel (%p225) target = $region134
      $region131: #{transe_forward.1} parent=126 // loop_body
        %v231 = vld [vmem:[%s229] sm:%s222]
        %232 = vst [vmem:[%s230] sm:%s222] %v231
      $region132: #{transe_forward.1} parent=126 // loop_footer
        %s228 = sadd.s32 1, %s224
      $region133: #{transe_forward.1} parent=126 // loop_footer_branch
        %223 = sbr.rel target = $region129
      $region134: #{transe_forward.1} parent=126 // loop_exit
        _
    $region127: #{transe_forward.1} parent=116 // pred_fallthru
      _
    // Predicated region
    $region146: #{transe_forward.1} parent=116 // pred_check
      _
    $region147: #{transe_forward.1} parent=116 // pred_check_branch
      %256 = sbr.rel (0) target = $region149
    $region148: #{transe_forward.1} parent=116 // pred_region
      %257 = vsyncadd %s213, 16
    $region149: #{transe_forward.1} parent=116 // pred_fallthru
      _
  $region117: #{transe_forward.1} parent=0 // loop_footer
    %s201 = sadd.s32 1, %s197
  $region118: #{transe_forward.1} parent=0 // loop_footer_branch
    %196 = sbr.rel target = $region114
  $region119: #{transe_forward.1} parent=0 // loop_exit
    _
  loop: start=0, step=1, limit=128
  $region150: #{transe_forward.1} parent=0 // loop_pre_header
    _
  $region151: #{transe_forward.1} parent=0 // loop_header
    %s259 = sphi 0, %s263
    %p260 = scmp.ge.s32.totalorder %s259, 128
  $region152: #{transe_forward.1} parent=0 // loop_header_branch
    %262 = sbr.rel (%p260) target = $region156
  $region153: #{transe_forward.1} parent=0 // loop_body
    %s264 = sadd.s32 %s17, %s259
    %s265 = sshra.s32 %s264, 7
    %s266 = sand.u32 %s264, 127
    %s267 = sadd.s32 %s265, 4
    %s268 = smul.u32 %s267, 128
    %s269 = sshra.s32 %s264, 7
    %s270 = sand.u32 %s264, 127
    %s271 = sadd.s32 %s268, %s270
    %s272 = sld [smem:[#allocation10 + %s271]]
    %s273 = scalar_lea.vmem %s2, %s272
    %s274 = scalar_lea.vmem [#allocation6], %s259
    %s275 = scalar_lea.sflag [#allocation8], 4
    %p277 = scmp.lt.u32.totalorder 1, 8
    %p278 = pneg %p277
    // Predicated region
    $region157: #{transe_forward.1} parent=153 // pred_check
      _
    $region158: #{transe_forward.1} parent=153 // pred_check_branch
      %280 = sbr.rel (%p277) target = $region160
    $region159: #{transe_forward.1} parent=153 // pred_region
      %s295 = sand.u32 1, 7
      %p296 = scmp.eq.s32.totalorder %s295, 0
      %p297 = pneg %p296
      // Predicated region
      $region172: #{transe_forward.1} parent=159 // pred_check
        _
      $region173: #{transe_forward.1} parent=159 // pred_check_branch
        %299 = sbr.rel (%p296) target = $region175
      $region174: #{transe_forward.1} parent=159 // pred_region
        %s300 = sand.u32 1, 7
        %s301 = ssub.s32 1, %s300
        %s302 = scalar_lea.vmem %s273, %s301
        %s303 = ssub.s32 1, %s300
        %s304 = scalar_lea.vmem %s274, %s303 [#allocation6]
        %s305 = sshllo.u32 0, %s300
        loop: start=0, step=1, limit=1
        $region176: #{transe_forward.1} parent=174 // loop_pre_header
          _
        $region177: #{transe_forward.1} parent=174 // loop_header
          %s307 = sphi 0, %s311
          %p308 = scmp.ge.s32.totalorder %s307, 1
          %s312 = sphi %s302, %s302
          %s313 = sphi %s304, %s304
        $region178: #{transe_forward.1} parent=174 // loop_header_branch
          %310 = sbr.rel (%p308) target = $region182
        $region179: #{transe_forward.1} parent=174 // loop_body
          %v314 = vld [vmem:[%s312] sm:%s305]
          %315 = vst [vmem:[%s313] sm:%s305] %v314
        $region180: #{transe_forward.1} parent=174 // loop_footer
          %s311 = sadd.s32 1, %s307
        $region181: #{transe_forward.1} parent=174 // loop_footer_branch
          %306 = sbr.rel target = $region177
        $region182: #{transe_forward.1} parent=174 // loop_exit
          _
      $region175: #{transe_forward.1} parent=159 // pred_fallthru
        _
    $region160: #{transe_forward.1} parent=153 // pred_fallthru
      _
    // Predicated region
    $region161: #{transe_forward.1} parent=153 // pred_check
      %p281 = pneg %p277
    $region162: #{transe_forward.1} parent=153 // pred_check_branch
      %283 = sbr.rel (%p281) target = $region164
    $region163: #{transe_forward.1} parent=153 // pred_region
      %s284 = sshllo.u32 0, 1
      loop: start=0, step=1, limit=1
      $region165: #{transe_forward.1} parent=163 // loop_pre_header
        _
      $region166: #{transe_forward.1} parent=163 // loop_header
        %s286 = sphi 0, %s290
        %p287 = scmp.ge.s32.totalorder %s286, 1
        %s291 = sphi %s273, %s273
        %s292 = sphi %s274, %s274
      $region167: #{transe_forward.1} parent=163 // loop_header_branch
        %289 = sbr.rel (%p287) target = $region171
      $region168: #{transe_forward.1} parent=163 // loop_body
        %v293 = vld [vmem:[%s291] sm:%s284]
        %294 = vst [vmem:[%s292] sm:%s284] %v293
      $region169: #{transe_forward.1} parent=163 // loop_footer
        %s290 = sadd.s32 1, %s286
      $region170: #{transe_forward.1} parent=163 // loop_footer_branch
        %285 = sbr.rel target = $region166
      $region171: #{transe_forward.1} parent=163 // loop_exit
        _
    $region164: #{transe_forward.1} parent=153 // pred_fallthru
      _
    // Predicated region
    $region183: #{transe_forward.1} parent=153 // pred_check
      _
    $region184: #{transe_forward.1} parent=153 // pred_check_branch
      %318 = sbr.rel (0) target = $region186
    $region185: #{transe_forward.1} parent=153 // pred_region
      %319 = vsyncadd %s275, 16
    $region186: #{transe_forward.1} parent=153 // pred_fallthru
      _
  $region154: #{transe_forward.1} parent=0 // loop_footer
    %s263 = sadd.s32 1, %s259
  $region155: #{transe_forward.1} parent=0 // loop_footer_branch
    %258 = sbr.rel target = $region151
  $region156: #{transe_forward.1} parent=0 // loop_exit
    _
  loop: start=0, step=1, limit=128
  $region187: #{transe_forward.1} parent=0 // loop_pre_header
    _
  $region188: #{transe_forward.1} parent=0 // loop_header
    %s321 = sphi 0, %s325
    %p322 = scmp.ge.s32.totalorder %s321, 128
  $region189: #{transe_forward.1} parent=0 // loop_header_branch
    %324 = sbr.rel (%p322) target = $region193
  $region190: #{transe_forward.1} parent=0 // loop_body
    %s326 = sadd.s32 %s17, %s321
    %s327 = sshra.s32 %s326, 7
    %s328 = sand.u32 %s326, 127
    %s329 = sadd.s32 %s327, 5
    %s330 = smul.u32 %s329, 128
    %s331 = sshra.s32 %s326, 7
    %s332 = sand.u32 %s326, 127
    %s333 = sadd.s32 %s330, %s332
    %s334 = sld [smem:[#allocation10 + %s333]]
    %s335 = scalar_lea.vmem %s1, %s334
    %s336 = scalar_lea.vmem [#allocation7], %s321
    %s337 = scalar_lea.sflag [#allocation8], 5
    %p339 = scmp.lt.u32.totalorder 1, 8
    %p340 = pneg %p339
    // Predicated region
    $region194: #{transe_forward.1} parent=190 // pred_check
      _
    $region195: #{transe_forward.1} parent=190 // pred_check_branch
      %342 = sbr.rel (%p339) target = $region197
    $region196: #{transe_forward.1} parent=190 // pred_region
      %s357 = sand.u32 1, 7
      %p358 = scmp.eq.s32.totalorder %s357, 0
      %p359 = pneg %p358
      // Predicated region
      $region209: #{transe_forward.1} parent=196 // pred_check
        _
      $region210: #{transe_forward.1} parent=196 // pred_check_branch
        %361 = sbr.rel (%p358) target = $region212
      $region211: #{transe_forward.1} parent=196 // pred_region
        %s362 = sand.u32 1, 7
        %s363 = ssub.s32 1, %s362
        %s364 = scalar_lea.vmem %s335, %s363
        %s365 = ssub.s32 1, %s362
        %s366 = scalar_lea.vmem %s336, %s365 [#allocation7]
        %s367 = sshllo.u32 0, %s362
        loop: start=0, step=1, limit=1
        $region213: #{transe_forward.1} parent=211 // loop_pre_header
          _
        $region214: #{transe_forward.1} parent=211 // loop_header
          %s369 = sphi 0, %s373
          %p370 = scmp.ge.s32.totalorder %s369, 1
          %s374 = sphi %s364, %s364
          %s375 = sphi %s366, %s366
        $region215: #{transe_forward.1} parent=211 // loop_header_branch
          %372 = sbr.rel (%p370) target = $region219
        $region216: #{transe_forward.1} parent=211 // loop_body
          %v376 = vld [vmem:[%s374] sm:%s367]
          %377 = vst [vmem:[%s375] sm:%s367] %v376
        $region217: #{transe_forward.1} parent=211 // loop_footer
          %s373 = sadd.s32 1, %s369
        $region218: #{transe_forward.1} parent=211 // loop_footer_branch
          %368 = sbr.rel target = $region214
        $region219: #{transe_forward.1} parent=211 // loop_exit
          _
      $region212: #{transe_forward.1} parent=196 // pred_fallthru
        _
    $region197: #{transe_forward.1} parent=190 // pred_fallthru
      _
    // Predicated region
    $region198: #{transe_forward.1} parent=190 // pred_check
      %p343 = pneg %p339
    $region199: #{transe_forward.1} parent=190 // pred_check_branch
      %345 = sbr.rel (%p343) target = $region201
    $region200: #{transe_forward.1} parent=190 // pred_region
      %s346 = sshllo.u32 0, 1
      loop: start=0, step=1, limit=1
      $region202: #{transe_forward.1} parent=200 // loop_pre_header
        _
      $region203: #{transe_forward.1} parent=200 // loop_header
        %s348 = sphi 0, %s352
        %p349 = scmp.ge.s32.totalorder %s348, 1
        %s353 = sphi %s335, %s335
        %s354 = sphi %s336, %s336
      $region204: #{transe_forward.1} parent=200 // loop_header_branch
        %351 = sbr.rel (%p349) target = $region208
      $region205: #{transe_forward.1} parent=200 // loop_body
        %v355 = vld [vmem:[%s353] sm:%s346]
        %356 = vst [vmem:[%s354] sm:%s346] %v355
      $region206: #{transe_forward.1} parent=200 // loop_footer
        %s352 = sadd.s32 1, %s348
      $region207: #{transe_forward.1} parent=200 // loop_footer_branch
        %347 = sbr.rel target = $region203
      $region208: #{transe_forward.1} parent=200 // loop_exit
        _
    $region201: #{transe_forward.1} parent=190 // pred_fallthru
      _
    // Predicated region
    $region220: #{transe_forward.1} parent=190 // pred_check
      _
    $region221: #{transe_forward.1} parent=190 // pred_check_branch
      %380 = sbr.rel (0) target = $region223
    $region222: #{transe_forward.1} parent=190 // pred_region
      %381 = vsyncadd %s337, 16
    $region223: #{transe_forward.1} parent=190 // pred_fallthru
      _
  $region191: #{transe_forward.1} parent=0 // loop_footer
    %s325 = sadd.s32 1, %s321
  $region192: #{transe_forward.1} parent=0 // loop_footer_branch
    %320 = sbr.rel target = $region188
  $region193: #{transe_forward.1} parent=0 // loop_exit
    _
  loop: start=0, step=1, limit=128
  $region224: #{transe_forward.1} parent=0 // loop_pre_header
    _
  $region225: #{transe_forward.1} parent=0 // loop_header
    %s383 = sphi 0, %s387
    %p384 = scmp.ge.s32.totalorder %s383, 128
  $region226: #{transe_forward.1} parent=0 // loop_header_branch
    %386 = sbr.rel (%p384) target = $region230
  $region227: #{transe_forward.1} parent=0 // loop_body
    %389 = dma.done [#allocation8], 16
  $region228: #{transe_forward.1} parent=0 // loop_footer
    %s387 = sadd.s32 1, %s383
  $region229: #{transe_forward.1} parent=0 // loop_footer_branch
    %382 = sbr.rel target = $region225
  $region230: #{transe_forward.1} parent=0 // loop_exit
    _
  loop: start=0, step=1, limit=128
  $region231: #{transe_forward.1} parent=0 // loop_pre_header
    _
  $region232: #{transe_forward.1} parent=0 // loop_header
    %s391 = sphi 0, %s395
    %p392 = scmp.ge.s32.totalorder %s391, 128
  $region233: #{transe_forward.1} parent=0 // loop_header_branch
    %394 = sbr.rel (%p392) target = $region237
  $region234: #{transe_forward.1} parent=0 // loop_body
    %s396 = scalar_lea.sflag [#allocation8], 1
    %398 = dma.done %s396, 16
  $region235: #{transe_forward.1} parent=0 // loop_footer
    %s395 = sadd.s32 1, %s391
  $region236: #{transe_forward.1} parent=0 // loop_footer_branch
    %390 = sbr.rel target = $region232
  $region237: #{transe_forward.1} parent=0 // loop_exit
    _
  loop: start=0, step=1, limit=128
  $region238: #{transe_forward.1} parent=0 // loop_pre_header
    _
  $region239: #{transe_forward.1} parent=0 // loop_header
    %s400 = sphi 0, %s404
    %p401 = scmp.ge.s32.totalorder %s400, 128
  $region240: #{transe_forward.1} parent=0 // loop_header_branch
    %403 = sbr.rel (%p401) target = $region244
  $region241: #{transe_forward.1} parent=0 // loop_body
    %s405 = scalar_lea.sflag [#allocation8], 2
    %407 = dma.done %s405, 16
  $region242: #{transe_forward.1} parent=0 // loop_footer
    %s404 = sadd.s32 1, %s400
  $region243: #{transe_forward.1} parent=0 // loop_footer_branch
    %399 = sbr.rel target = $region239
  $region244: #{transe_forward.1} parent=0 // loop_exit
    _
  loop: start=0, step=1, limit=128
  $region245: #{transe_forward.1} parent=0 // loop_pre_header
    _
  $region246: #{transe_forward.1} parent=0 // loop_header
    %s409 = sphi 0, %s413
    %p410 = scmp.ge.s32.totalorder %s409, 128
  $region247: #{transe_forward.1} parent=0 // loop_header_branch
    %412 = sbr.rel (%p410) target = $region251
  $region248: #{transe_forward.1} parent=0 // loop_body
    %s414 = scalar_lea.sflag [#allocation8], 3
    %416 = dma.done %s414, 16
  $region249: #{transe_forward.1} parent=0 // loop_footer
    %s413 = sadd.s32 1, %s409
  $region250: #{transe_forward.1} parent=0 // loop_footer_branch
    %408 = sbr.rel target = $region246
  $region251: #{transe_forward.1} parent=0 // loop_exit
    _
  loop: start=0, step=1, limit=128
  $region252: #{transe_forward.1} parent=0 // loop_pre_header
    _
  $region253: #{transe_forward.1} parent=0 // loop_header
    %s418 = sphi 0, %s422
    %p419 = scmp.ge.s32.totalorder %s418, 128
  $region254: #{transe_forward.1} parent=0 // loop_header_branch
    %421 = sbr.rel (%p419) target = $region258
  $region255: #{transe_forward.1} parent=0 // loop_body
    %s423 = scalar_lea.sflag [#allocation8], 4
    %425 = dma.done %s423, 16
  $region256: #{transe_forward.1} parent=0 // loop_footer
    %s422 = sadd.s32 1, %s418
  $region257: #{transe_forward.1} parent=0 // loop_footer_branch
    %417 = sbr.rel target = $region253
  $region258: #{transe_forward.1} parent=0 // loop_exit
    _
  loop: start=0, step=1, limit=128
  $region259: #{transe_forward.1} parent=0 // loop_pre_header
    _
  $region260: #{transe_forward.1} parent=0 // loop_header
    %s427 = sphi 0, %s431
    %p428 = scmp.ge.s32.totalorder %s427, 128
  $region261: #{transe_forward.1} parent=0 // loop_header_branch
    %430 = sbr.rel (%p428) target = $region265
  $region262: #{transe_forward.1} parent=0 // loop_body
    %s432 = scalar_lea.sflag [#allocation8], 5
    %434 = dma.done %s432, 16
  $region263: #{transe_forward.1} parent=0 // loop_footer
    %s431 = sadd.s32 1, %s427
  $region264: #{transe_forward.1} parent=0 // loop_footer_branch
    %426 = sbr.rel target = $region260
  $region265: #{transe_forward.1} parent=0 // loop_exit
    _
  %v435 = vld [vmem:[#allocation2] sm:$0xff]
  %v436 = vld [vmem:[#allocation2 + $0x8] sm:$0xff]
  %v437 = vld [vmem:[#allocation2 + $0x10] sm:$0xff]
  %v438 = vld [vmem:[#allocation2 + $0x18] sm:$0xff]
  %v439 = vld [vmem:[#allocation2 + $0x20] sm:$0xff]
  %v440 = vld [vmem:[#allocation2 + $0x28] sm:$0xff]
  %v441 = vld [vmem:[#allocation2 + $0x30] sm:$0xff]
  %v442 = vld [vmem:[#allocation2 + $0x38] sm:$0xff]
  %v443 = vld [vmem:[#allocation2 + $0x40] sm:$0xff]
  %v444 = vld [vmem:[#allocation2 + $0x48] sm:$0xff]
  %v445 = vld [vmem:[#allocation2 + $0x50] sm:$0xff]
  %v446 = vld [vmem:[#allocation2 + $0x58] sm:$0xff]
  %v447 = vld [vmem:[#allocation2 + $0x60] sm:$0xff]
  %v448 = vld [vmem:[#allocation2 + $0x68] sm:$0xff]
  %v449 = vld [vmem:[#allocation2 + $0x70] sm:$0xff]
  %v450 = vld [vmem:[#allocation2 + $0x78] sm:$0xff]
  %v451 = vld [vmem:[#allocation3] sm:$0xff]
  %v452 = vld [vmem:[#allocation3 + $0x8] sm:$0xff]
  %v453 = vld [vmem:[#allocation3 + $0x10] sm:$0xff]
  %v454 = vld [vmem:[#allocation3 + $0x18] sm:$0xff]
  %v455 = vld [vmem:[#allocation3 + $0x20] sm:$0xff]
  %v456 = vld [vmem:[#allocation3 + $0x28] sm:$0xff]
  %v457 = vld [vmem:[#allocation3 + $0x30] sm:$0xff]
  %v458 = vld [vmem:[#allocation3 + $0x38] sm:$0xff]
  %v459 = vld [vmem:[#allocation3 + $0x40] sm:$0xff]
  %v460 = vld [vmem:[#allocation3 + $0x48] sm:$0xff]
  %v461 = vld [vmem:[#allocation3 + $0x50] sm:$0xff]
  %v462 = vld [vmem:[#allocation3 + $0x58] sm:$0xff]
  %v463 = vld [vmem:[#allocation3 + $0x60] sm:$0xff]
  %v464 = vld [vmem:[#allocation3 + $0x68] sm:$0xff]
  %v465 = vld [vmem:[#allocation3 + $0x70] sm:$0xff]
  %v466 = vld [vmem:[#allocation3 + $0x78] sm:$0xff]
  %v467 = vadd.f32 %v435, %v451
  %v468 = vadd.f32 %v436, %v452
  %v469 = vadd.f32 %v437, %v453
  %v470 = vadd.f32 %v438, %v454
  %v471 = vadd.f32 %v439, %v455
  %v472 = vadd.f32 %v440, %v456
  %v473 = vadd.f32 %v441, %v457
  %v474 = vadd.f32 %v442, %v458
  %v475 = vadd.f32 %v443, %v459
  %v476 = vadd.f32 %v444, %v460
  %v477 = vadd.f32 %v445, %v461
  %v478 = vadd.f32 %v446, %v462
  %v479 = vadd.f32 %v447, %v463
  %v480 = vadd.f32 %v448, %v464
  %v481 = vadd.f32 %v449, %v465
  %v482 = vadd.f32 %v450, %v466
  %v483 = vld [vmem:[#allocation4] sm:$0xff]
  %v484 = vld [vmem:[#allocation4 + $0x8] sm:$0xff]
  %v485 = vld [vmem:[#allocation4 + $0x10] sm:$0xff]
  %v486 = vld [vmem:[#allocation4 + $0x18] sm:$0xff]
  %v487 = vld [vmem:[#allocation4 + $0x20] sm:$0xff]
  %v488 = vld [vmem:[#allocation4 + $0x28] sm:$0xff]
  %v489 = vld [vmem:[#allocation4 + $0x30] sm:$0xff]
  %v490 = vld [vmem:[#allocation4 + $0x38] sm:$0xff]
  %v491 = vld [vmem:[#allocation4 + $0x40] sm:$0xff]
  %v492 = vld [vmem:[#allocation4 + $0x48] sm:$0xff]
  %v493 = vld [vmem:[#allocation4 + $0x50] sm:$0xff]
  %v494 = vld [vmem:[#allocation4 + $0x58] sm:$0xff]
  %v495 = vld [vmem:[#allocation4 + $0x60] sm:$0xff]
  %v496 = vld [vmem:[#allocation4 + $0x68] sm:$0xff]
  %v497 = vld [vmem:[#allocation4 + $0x70] sm:$0xff]
  %v498 = vld [vmem:[#allocation4 + $0x78] sm:$0xff]
  %v499 = vsub.f32 %v467, %v483
  %v500 = vsub.f32 %v468, %v484
  %v501 = vsub.f32 %v469, %v485
  %v502 = vsub.f32 %v470, %v486
  %v503 = vsub.f32 %v471, %v487
  %v504 = vsub.f32 %v472, %v488
  %v505 = vsub.f32 %v473, %v489
  %v506 = vsub.f32 %v474, %v490
  %v507 = vsub.f32 %v475, %v491
  %v508 = vsub.f32 %v476, %v492
  %v509 = vsub.f32 %v477, %v493
  %v510 = vsub.f32 %v478, %v494
  %v511 = vsub.f32 %v479, %v495
  %v512 = vsub.f32 %v480, %v496
  %v513 = vsub.f32 %v481, %v497
  %v514 = vsub.f32 %v482, %v498
  %v515 = vld [vmem:[#allocation5] sm:$0xff]
  %v516 = vld [vmem:[#allocation5 + $0x8] sm:$0xff]
  %v517 = vld [vmem:[#allocation5 + $0x10] sm:$0xff]
  %v518 = vld [vmem:[#allocation5 + $0x18] sm:$0xff]
  %v519 = vld [vmem:[#allocation5 + $0x20] sm:$0xff]
  %v520 = vld [vmem:[#allocation5 + $0x28] sm:$0xff]
  %v521 = vld [vmem:[#allocation5 + $0x30] sm:$0xff]
  %v522 = vld [vmem:[#allocation5 + $0x38] sm:$0xff]
  %v523 = vld [vmem:[#allocation5 + $0x40] sm:$0xff]
  %v524 = vld [vmem:[#allocation5 + $0x48] sm:$0xff]
  %v525 = vld [vmem:[#allocation5 + $0x50] sm:$0xff]
  %v526 = vld [vmem:[#allocation5 + $0x58] sm:$0xff]
  %v527 = vld [vmem:[#allocation5 + $0x60] sm:$0xff]
  %v528 = vld [vmem:[#allocation5 + $0x68] sm:$0xff]
  %v529 = vld [vmem:[#allocation5 + $0x70] sm:$0xff]
  %v530 = vld [vmem:[#allocation5 + $0x78] sm:$0xff]
  %v531 = vld [vmem:[#allocation6] sm:$0xff]
  %v532 = vld [vmem:[#allocation6 + $0x8] sm:$0xff]
  %v533 = vld [vmem:[#allocation6 + $0x10] sm:$0xff]
  %v534 = vld [vmem:[#allocation6 + $0x18] sm:$0xff]
  %v535 = vld [vmem:[#allocation6 + $0x20] sm:$0xff]
  %v536 = vld [vmem:[#allocation6 + $0x28] sm:$0xff]
  %v537 = vld [vmem:[#allocation6 + $0x30] sm:$0xff]
  %v538 = vld [vmem:[#allocation6 + $0x38] sm:$0xff]
  %v539 = vld [vmem:[#allocation6 + $0x40] sm:$0xff]
  %v540 = vld [vmem:[#allocation6 + $0x48] sm:$0xff]
  %v541 = vld [vmem:[#allocation6 + $0x50] sm:$0xff]
  %v542 = vld [vmem:[#allocation6 + $0x58] sm:$0xff]
  %v543 = vld [vmem:[#allocation6 + $0x60] sm:$0xff]
  %v544 = vld [vmem:[#allocation6 + $0x68] sm:$0xff]
  %v545 = vld [vmem:[#allocation6 + $0x70] sm:$0xff]
  %v546 = vld [vmem:[#allocation6 + $0x78] sm:$0xff]
  %v547 = vadd.f32 %v515, %v531
  %v548 = vadd.f32 %v516, %v532
  %v549 = vadd.f32 %v517, %v533
  %v550 = vadd.f32 %v518, %v534
  %v551 = vadd.f32 %v519, %v535
  %v552 = vadd.f32 %v520, %v536
  %v553 = vadd.f32 %v521, %v537
  %v554 = vadd.f32 %v522, %v538
  %v555 = vadd.f32 %v523, %v539
  %v556 = vadd.f32 %v524, %v540
  %v557 = vadd.f32 %v525, %v541
  %v558 = vadd.f32 %v526, %v542
  %v559 = vadd.f32 %v527, %v543
  %v560 = vadd.f32 %v528, %v544
  %v561 = vadd.f32 %v529, %v545
  %v562 = vadd.f32 %v530, %v546
  %v563 = vld [vmem:[#allocation7] sm:$0xff]
  %v564 = vld [vmem:[#allocation7 + $0x8] sm:$0xff]
  %v565 = vld [vmem:[#allocation7 + $0x10] sm:$0xff]
  %v566 = vld [vmem:[#allocation7 + $0x18] sm:$0xff]
  %v567 = vld [vmem:[#allocation7 + $0x20] sm:$0xff]
  %v568 = vld [vmem:[#allocation7 + $0x28] sm:$0xff]
  %v569 = vld [vmem:[#allocation7 + $0x30] sm:$0xff]
  %v570 = vld [vmem:[#allocation7 + $0x38] sm:$0xff]
  %v571 = vld [vmem:[#allocation7 + $0x40] sm:$0xff]
  %v572 = vld [vmem:[#allocation7 + $0x48] sm:$0xff]
  %v573 = vld [vmem:[#allocation7 + $0x50] sm:$0xff]
  %v574 = vld [vmem:[#allocation7 + $0x58] sm:$0xff]
  %v575 = vld [vmem:[#allocation7 + $0x60] sm:$0xff]
  %v576 = vld [vmem:[#allocation7 + $0x68] sm:$0xff]
  %v577 = vld [vmem:[#allocation7 + $0x70] sm:$0xff]
  %v578 = vld [vmem:[#allocation7 + $0x78] sm:$0xff]
  %v579 = vsub.f32 %v547, %v563
  %v580 = vsub.f32 %v548, %v564
  %v581 = vsub.f32 %v549, %v565
  %v582 = vsub.f32 %v550, %v566
  %v583 = vsub.f32 %v551, %v567
  %v584 = vsub.f32 %v552, %v568
  %v585 = vsub.f32 %v553, %v569
  %v586 = vsub.f32 %v554, %v570
  %v587 = vsub.f32 %v555, %v571
  %v588 = vsub.f32 %v556, %v572
  %v589 = vsub.f32 %v557, %v573
  %v590 = vsub.f32 %v558, %v574
  %v591 = vsub.f32 %v559, %v575
  %v592 = vsub.f32 %v560, %v576
  %v593 = vsub.f32 %v561, %v577
  %v594 = vsub.f32 %v562, %v578
  %v595 = vmul.f32 %v499, %v499
  %v596 = vmul.f32 %v500, %v500
  %v597 = vmul.f32 %v501, %v501
  %v598 = vmul.f32 %v502, %v502
  %v599 = vmul.f32 %v503, %v503
  %v600 = vmul.f32 %v504, %v504
  %v601 = vmul.f32 %v505, %v505
  %v602 = vmul.f32 %v506, %v506
  %v603 = vmul.f32 %v507, %v507
  %v604 = vmul.f32 %v508, %v508
  %v605 = vmul.f32 %v509, %v509
  %v606 = vmul.f32 %v510, %v510
  %v607 = vmul.f32 %v511, %v511
  %v608 = vmul.f32 %v512, %v512
  %v609 = vmul.f32 %v513, %v513
  %v610 = vmul.f32 %v514, %v514
  %v611 = vmul.f32 %v579, %v579
  %v612 = vmul.f32 %v580, %v580
  %v613 = vmul.f32 %v581, %v581
  %v614 = vmul.f32 %v582, %v582
  %v615 = vmul.f32 %v583, %v583
  %v616 = vmul.f32 %v584, %v584
  %v617 = vmul.f32 %v585, %v585
  %v618 = vmul.f32 %v586, %v586
  %v619 = vmul.f32 %v587, %v587
  %v620 = vmul.f32 %v588, %v588
  %v621 = vmul.f32 %v589, %v589
  %v622 = vmul.f32 %v590, %v590
  %v623 = vmul.f32 %v591, %v591
  %v624 = vmul.f32 %v592, %v592
  %v625 = vmul.f32 %v593, %v593
  %v626 = vmul.f32 %v594, %v594
  %627 = vmatprep.subr.mxu0 0.0
  %v628 = vand.u32 %v595, 4294901760
  %629 = vmatpush1.xpose.msra.mxu0 %v628
  %630 = vmatprep.subr.mxu0 0.0
  %v631 = vand.u32 %v596, 4294901760
  %632 = vmatpush1.xpose.msra.mxu0 %v631
  %633 = vmatprep.subr.mxu0 0.0
  %v634 = vand.u32 %v597, 4294901760
  %635 = vmatpush1.xpose.msra.mxu0 %v634
  %636 = vmatprep.subr.mxu0 0.0
  %v637 = vand.u32 %v598, 4294901760
  %638 = vmatpush1.xpose.msra.mxu0 %v637
  %639 = vmatprep.subr.mxu0 0.0
  %v640 = vand.u32 %v599, 4294901760
  %641 = vmatpush1.xpose.msra.mxu0 %v640
  %642 = vmatprep.subr.mxu0 0.0
  %v643 = vand.u32 %v600, 4294901760
  %644 = vmatpush1.xpose.msra.mxu0 %v643
  %645 = vmatprep.subr.mxu0 0.0
  %v646 = vand.u32 %v601, 4294901760
  %647 = vmatpush1.xpose.msra.mxu0 %v646
  %648 = vmatprep.subr.mxu0 0.0
  %v649 = vand.u32 %v602, 4294901760
  %650 = vmatpush1.xpose.msra.mxu0 %v649
  %651 = vmatprep.subr.mxu0 0.0
  %v652 = vand.u32 %v603, 4294901760
  %653 = vmatpush1.xpose.msra.mxu0 %v652
  %654 = vmatprep.subr.mxu0 0.0
  %v655 = vand.u32 %v604, 4294901760
  %656 = vmatpush1.xpose.msra.mxu0 %v655
  %657 = vmatprep.subr.mxu0 0.0
  %v658 = vand.u32 %v605, 4294901760
  %659 = vmatpush1.xpose.msra.mxu0 %v658
  %660 = vmatprep.subr.mxu0 0.0
  %v661 = vand.u32 %v606, 4294901760
  %662 = vmatpush1.xpose.msra.mxu0 %v661
  %663 = vmatprep.subr.mxu0 0.0
  %v664 = vand.u32 %v607, 4294901760
  %665 = vmatpush1.xpose.msra.mxu0 %v664
  %666 = vmatprep.subr.mxu0 0.0
  %v667 = vand.u32 %v608, 4294901760
  %668 = vmatpush1.xpose.msra.mxu0 %v667
  %669 = vmatprep.subr.mxu0 0.0
  %v670 = vand.u32 %v609, 4294901760
  %671 = vmatpush1.xpose.msra.mxu0 %v670
  %672 = vmatprep.subr.mxu0 0.0
  %v673 = vand.u32 %v610, 4294901760
  %674 = vmatpush1.xpose.msra.mxu0 %v673
  %675 = vmatprep.subr.mxu0 0.0
  %676 = vmatpush1.xpose.msra.mxu0 0.0
  %677 = vmatprep.subr.mxu0 0.0
  %678 = vmatpush1.xpose.msra.mxu0 0.0
  %679 = vmatprep.subr.mxu0 0.0
  %680 = vmatpush1.xpose.msra.mxu0 0.0
  %681 = vmatprep.subr.mxu0 0.0
  %682 = vmatpush1.xpose.msra.mxu0 0.0
  %683 = vmatprep.subr.mxu0 0.0
  %684 = vmatpush1.xpose.msra.mxu0 0.0
  %685 = vmatprep.subr.mxu0 0.0
  %686 = vmatpush1.xpose.msra.mxu0 0.0
  %687 = vmatprep.subr.mxu0 0.0
  %688 = vmatpush1.xpose.msra.mxu0 0.0
  %689 = vmatprep.subr.mxu0 0.0
  %690 = vmatpush1.xpose.msra.mxu0 0.0
  %691 = vmatprep.subr.mxu0 0.0
  %692 = vmatpush1.xpose.msra.mxu0 0.0
  %693 = vmatprep.subr.mxu0 0.0
  %694 = vmatpush1.xpose.msra.mxu0 0.0
  %695 = vmatprep.subr.mxu0 0.0
  %696 = vmatpush1.xpose.msra.mxu0 0.0
  %697 = vmatprep.subr.mxu0 0.0
  %698 = vmatpush1.xpose.msra.mxu0 0.0
  %699 = vmatprep.subr.mxu0 0.0
  %700 = vmatpush1.xpose.msra.mxu0 0.0
  %701 = vmatprep.subr.mxu0 0.0
  %702 = vmatpush1.xpose.msra.mxu0 0.0
  %703 = vmatprep.subr.mxu0 0.0
  %704 = vmatpush1.xpose.msra.mxu0 0.0
  %705 = vmatprep.subr.mxu0 0.0
  %706 = vmatpush1.xpose.msra.mxu0 0.0
  %707 = vmatprep.mubr.f32.mxu0 0.0
  %708 = vmatmul.mubr.f32.gmra.mrb[0].mxu0 0.0
  %v709 = vpop.f32.mrb[0].mxu0
  %v710 = vadd.f32 0.0, %v709
  %v711 = vpop.f32.mrb[0].mxu0
  %712 = vdwg.mxu0
  %713 = vmatprep.subr.mxu0 0.0
  %v714 = vand.u32 %v595, 4294901760
  %v715 = vsub.f32 %v595, %v714
  %v716 = vand.u32 %v715, 4294901760
  %v717 = vsub.f32 %v715, %v716
  %v718 = vand.u32 %v717, 4294901760
  %719 = vmatpush1.xpose.msra.mxu0 %v718
  %720 = vmatprep.subr.mxu0 0.0
  %v721 = vand.u32 %v596, 4294901760
  %v722 = vsub.f32 %v596, %v721
  %v723 = vand.u32 %v722, 4294901760
  %v724 = vsub.f32 %v722, %v723
  %v725 = vand.u32 %v724, 4294901760
  %726 = vmatpush1.xpose.msra.mxu0 %v725
  %727 = vmatprep.subr.mxu0 0.0
  %v728 = vand.u32 %v597, 4294901760
  %v729 = vsub.f32 %v597, %v728
  %v730 = vand.u32 %v729, 4294901760
  %v731 = vsub.f32 %v729, %v730
  %v732 = vand.u32 %v731, 4294901760
  %733 = vmatpush1.xpose.msra.mxu0 %v732
  %734 = vmatprep.subr.mxu0 0.0
  %v735 = vand.u32 %v598, 4294901760
  %v736 = vsub.f32 %v598, %v735
  %v737 = vand.u32 %v736, 4294901760
  %v738 = vsub.f32 %v736, %v737
  %v739 = vand.u32 %v738, 4294901760
  %740 = vmatpush1.xpose.msra.mxu0 %v739
  %741 = vmatprep.subr.mxu0 0.0
  %v742 = vand.u32 %v599, 4294901760
  %v743 = vsub.f32 %v599, %v742
  %v744 = vand.u32 %v743, 4294901760
  %v745 = vsub.f32 %v743, %v744
  %v746 = vand.u32 %v745, 4294901760
  %747 = vmatpush1.xpose.msra.mxu0 %v746
  %748 = vmatprep.subr.mxu0 0.0
  %v749 = vand.u32 %v600, 4294901760
  %v750 = vsub.f32 %v600, %v749
  %v751 = vand.u32 %v750, 4294901760
  %v752 = vsub.f32 %v750, %v751
  %v753 = vand.u32 %v752, 4294901760
  %754 = vmatpush1.xpose.msra.mxu0 %v753
  %755 = vmatprep.subr.mxu0 0.0
  %v756 = vand.u32 %v601, 4294901760
  %v757 = vsub.f32 %v601, %v756
  %v758 = vand.u32 %v757, 4294901760
  %v759 = vsub.f32 %v757, %v758
  %v760 = vand.u32 %v759, 4294901760
  %761 = vmatpush1.xpose.msra.mxu0 %v760
  %762 = vmatprep.subr.mxu0 0.0
  %v763 = vand.u32 %v602, 4294901760
  %v764 = vsub.f32 %v602, %v763
  %v765 = vand.u32 %v764, 4294901760
  %v766 = vsub.f32 %v764, %v765
  %v767 = vand.u32 %v766, 4294901760
  %768 = vmatpush1.xpose.msra.mxu0 %v767
  %769 = vmatprep.subr.mxu0 0.0
  %v770 = vand.u32 %v603, 4294901760
  %v771 = vsub.f32 %v603, %v770
  %v772 = vand.u32 %v771, 4294901760
  %v773 = vsub.f32 %v771, %v772
  %v774 = vand.u32 %v773, 4294901760
  %775 = vmatpush1.xpose.msra.mxu0 %v774
  %776 = vmatprep.subr.mxu0 0.0
  %v777 = vand.u32 %v604, 4294901760
  %v778 = vsub.f32 %v604, %v777
  %v779 = vand.u32 %v778, 4294901760
  %v780 = vsub.f32 %v778, %v779
  %v781 = vand.u32 %v780, 4294901760
  %782 = vmatpush1.xpose.msra.mxu0 %v781
  %783 = vmatprep.subr.mxu0 0.0
  %v784 = vand.u32 %v605, 4294901760
  %v785 = vsub.f32 %v605, %v784
  %v786 = vand.u32 %v785, 4294901760
  %v787 = vsub.f32 %v785, %v786
  %v788 = vand.u32 %v787, 4294901760
  %789 = vmatpush1.xpose.msra.mxu0 %v788
  %790 = vmatprep.subr.mxu0 0.0
  %v791 = vand.u32 %v606, 4294901760
  %v792 = vsub.f32 %v606, %v791
  %v793 = vand.u32 %v792, 4294901760
  %v794 = vsub.f32 %v792, %v793
  %v795 = vand.u32 %v794, 4294901760
  %796 = vmatpush1.xpose.msra.mxu0 %v795
  %797 = vmatprep.subr.mxu0 0.0
  %v798 = vand.u32 %v607, 4294901760
  %v799 = vsub.f32 %v607, %v798
  %v800 = vand.u32 %v799, 4294901760
  %v801 = vsub.f32 %v799, %v800
  %v802 = vand.u32 %v801, 4294901760
  %803 = vmatpush1.xpose.msra.mxu0 %v802
  %804 = vmatprep.subr.mxu0 0.0
  %v805 = vand.u32 %v608, 4294901760
  %v806 = vsub.f32 %v608, %v805
  %v807 = vand.u32 %v806, 4294901760
  %v808 = vsub.f32 %v806, %v807
  %v809 = vand.u32 %v808, 4294901760
  %810 = vmatpush1.xpose.msra.mxu0 %v809
  %811 = vmatprep.subr.mxu0 0.0
  %v812 = vand.u32 %v609, 4294901760
  %v813 = vsub.f32 %v609, %v812
  %v814 = vand.u32 %v813, 4294901760
  %v815 = vsub.f32 %v813, %v814
  %v816 = vand.u32 %v815, 4294901760
  %817 = vmatpush1.xpose.msra.mxu0 %v816
  %818 = vmatprep.subr.mxu0 0.0
  %v819 = vand.u32 %v610, 4294901760
  %v820 = vsub.f32 %v610, %v819
  %v821 = vand.u32 %v820, 4294901760
  %v822 = vsub.f32 %v820, %v821
  %v823 = vand.u32 %v822, 4294901760
  %824 = vmatpush1.xpose.msra.mxu0 %v823
  %825 = vmatprep.subr.mxu0 0.0
  %826 = vmatpush1.xpose.msra.mxu0 0.0
  %827 = vmatprep.subr.mxu0 0.0
  %828 = vmatpush1.xpose.msra.mxu0 0.0
  %829 = vmatprep.subr.mxu0 0.0
  %830 = vmatpush1.xpose.msra.mxu0 0.0
  %831 = vmatprep.subr.mxu0 0.0
  %832 = vmatpush1.xpose.msra.mxu0 0.0
  %833 = vmatprep.subr.mxu0 0.0
  %834 = vmatpush1.xpose.msra.mxu0 0.0
  %835 = vmatprep.subr.mxu0 0.0
  %836 = vmatpush1.xpose.msra.mxu0 0.0
  %837 = vmatprep.subr.mxu0 0.0
  %838 = vmatpush1.xpose.msra.mxu0 0.0
  %839 = vmatprep.subr.mxu0 0.0
  %840 = vmatpush1.xpose.msra.mxu0 0.0
  %841 = vmatprep.subr.mxu0 0.0
  %842 = vmatpush1.xpose.msra.mxu0 0.0
  %843 = vmatprep.subr.mxu0 0.0
  %844 = vmatpush1.xpose.msra.mxu0 0.0
  %845 = vmatprep.subr.mxu0 0.0
  %846 = vmatpush1.xpose.msra.mxu0 0.0
  %847 = vmatprep.subr.mxu0 0.0
  %848 = vmatpush1.xpose.msra.mxu0 0.0
  %849 = vmatprep.subr.mxu0 0.0
  %850 = vmatpush1.xpose.msra.mxu0 0.0
  %851 = vmatprep.subr.mxu0 0.0
  %852 = vmatpush1.xpose.msra.mxu0 0.0
  %853 = vmatprep.subr.mxu0 0.0
  %854 = vmatpush1.xpose.msra.mxu0 0.0
  %855 = vmatprep.subr.mxu0 0.0
  %856 = vmatpush1.xpose.msra.mxu0 0.0
  %857 = vmatprep.mubr.f32.mxu0 0.0
  %858 = vmatmul.mubr.f32.gmra.mrb[0].mxu0 1.0
  %v859 = vpop.f32.mrb[0].mxu0
  %v860 = vadd.f32 %v710, %v859
  %v861 = vpop.f32.mrb[0].mxu0
  %862 = vdwg.mxu0
  %863 = vmatprep.subr.mxu0 0.0
  %v864 = vand.u32 %v595, 4294901760
  %v865 = vsub.f32 %v595, %v864
  %866 = vmatpush1.xpose.msra.mxu0 %v865
  %867 = vmatprep.subr.mxu0 0.0
  %v868 = vand.u32 %v596, 4294901760
  %v869 = vsub.f32 %v596, %v868
  %870 = vmatpush1.xpose.msra.mxu0 %v869
  %871 = vmatprep.subr.mxu0 0.0
  %v872 = vand.u32 %v597, 4294901760
  %v873 = vsub.f32 %v597, %v872
  %874 = vmatpush1.xpose.msra.mxu0 %v873
  %875 = vmatprep.subr.mxu0 0.0
  %v876 = vand.u32 %v598, 4294901760
  %v877 = vsub.f32 %v598, %v876
  %878 = vmatpush1.xpose.msra.mxu0 %v877
  %879 = vmatprep.subr.mxu0 0.0
  %v880 = vand.u32 %v599, 4294901760
  %v881 = vsub.f32 %v599, %v880
  %882 = vmatpush1.xpose.msra.mxu0 %v881
  %883 = vmatprep.subr.mxu0 0.0
  %v884 = vand.u32 %v600, 4294901760
  %v885 = vsub.f32 %v600, %v884
  %886 = vmatpush1.xpose.msra.mxu0 %v885
  %887 = vmatprep.subr.mxu0 0.0
  %v888 = vand.u32 %v601, 4294901760
  %v889 = vsub.f32 %v601, %v888
  %890 = vmatpush1.xpose.msra.mxu0 %v889
  %891 = vmatprep.subr.mxu0 0.0
  %v892 = vand.u32 %v602, 4294901760
  %v893 = vsub.f32 %v602, %v892
  %894 = vmatpush1.xpose.msra.mxu0 %v893
  %895 = vmatprep.subr.mxu0 0.0
  %v896 = vand.u32 %v603, 4294901760
  %v897 = vsub.f32 %v603, %v896
  %898 = vmatpush1.xpose.msra.mxu0 %v897
  %899 = vmatprep.subr.mxu0 0.0
  %v900 = vand.u32 %v604, 4294901760
  %v901 = vsub.f32 %v604, %v900
  %902 = vmatpush1.xpose.msra.mxu0 %v901
  %903 = vmatprep.subr.mxu0 0.0
  %v904 = vand.u32 %v605, 4294901760
  %v905 = vsub.f32 %v605, %v904
  %906 = vmatpush1.xpose.msra.mxu0 %v905
  %907 = vmatprep.subr.mxu0 0.0
  %v908 = vand.u32 %v606, 4294901760
  %v909 = vsub.f32 %v606, %v908
  %910 = vmatpush1.xpose.msra.mxu0 %v909
  %911 = vmatprep.subr.mxu0 0.0
  %v912 = vand.u32 %v607, 4294901760
  %v913 = vsub.f32 %v607, %v912
  %914 = vmatpush1.xpose.msra.mxu0 %v913
  %915 = vmatprep.subr.mxu0 0.0
  %v916 = vand.u32 %v608, 4294901760
  %v917 = vsub.f32 %v608, %v916
  %918 = vmatpush1.xpose.msra.mxu0 %v917
  %919 = vmatprep.subr.mxu0 0.0
  %v920 = vand.u32 %v609, 4294901760
  %v921 = vsub.f32 %v609, %v920
  %922 = vmatpush1.xpose.msra.mxu0 %v921
  %923 = vmatprep.subr.mxu0 0.0
  %v924 = vand.u32 %v610, 4294901760
  %v925 = vsub.f32 %v610, %v924
  %926 = vmatpush1.xpose.msra.mxu0 %v925
  %927 = vmatprep.subr.mxu0 0.0
  %928 = vmatpush1.xpose.msra.mxu0 0.0
  %929 = vmatprep.subr.mxu0 0.0
  %930 = vmatpush1.xpose.msra.mxu0 0.0
  %931 = vmatprep.subr.mxu0 0.0
  %932 = vmatpush1.xpose.msra.mxu0 0.0
  %933 = vmatprep.subr.mxu0 0.0
  %934 = vmatpush1.xpose.msra.mxu0 0.0
  %935 = vmatprep.subr.mxu0 0.0
  %936 = vmatpush1.xpose.msra.mxu0 0.0
  %937 = vmatprep.subr.mxu0 0.0
  %938 = vmatpush1.xpose.msra.mxu0 0.0
  %939 = vmatprep.subr.mxu0 0.0
  %940 = vmatpush1.xpose.msra.mxu0 0.0
  %941 = vmatprep.subr.mxu0 0.0
  %942 = vmatpush1.xpose.msra.mxu0 0.0
  %943 = vmatprep.subr.mxu0 0.0
  %944 = vmatpush1.xpose.msra.mxu0 0.0
  %945 = vmatprep.subr.mxu0 0.0
  %946 = vmatpush1.xpose.msra.mxu0 0.0
  %947 = vmatprep.subr.mxu0 0.0
  %948 = vmatpush1.xpose.msra.mxu0 0.0
  %949 = vmatprep.subr.mxu0 0.0
  %950 = vmatpush1.xpose.msra.mxu0 0.0
  %951 = vmatprep.subr.mxu0 0.0
  %952 = vmatpush1.xpose.msra.mxu0 0.0
  %953 = vmatprep.subr.mxu0 0.0
  %954 = vmatpush1.xpose.msra.mxu0 0.0
  %955 = vmatprep.subr.mxu0 0.0
  %956 = vmatpush1.xpose.msra.mxu0 0.0
  %957 = vmatprep.subr.mxu0 0.0
  %958 = vmatpush1.xpose.msra.mxu0 0.0
  %959 = vmatprep.mubr.f32.mxu0 0.0
  %960 = vmatmul.mubr.f32.gmra.mrb[0].mxu0 0.0
  %v961 = vpop.f32.mrb[0].mxu0
  %v962 = vadd.f32 %v860, %v961
  %v963 = vpop.f32.mrb[0].mxu0
  %964 = vdwg.mxu0
  %965 = vmatprep.subr.mxu0 0.0
  %v966 = vand.u32 %v595, 4294901760
  %967 = vmatpush1.xpose.msra.mxu0 %v966
  %968 = vmatprep.subr.mxu0 0.0
  %v969 = vand.u32 %v596, 4294901760
  %970 = vmatpush1.xpose.msra.mxu0 %v969
  %971 = vmatprep.subr.mxu0 0.0
  %v972 = vand.u32 %v597, 4294901760
  %973 = vmatpush1.xpose.msra.mxu0 %v972
  %974 = vmatprep.subr.mxu0 0.0
  %v975 = vand.u32 %v598, 4294901760
  %976 = vmatpush1.xpose.msra.mxu0 %v975
  %977 = vmatprep.subr.mxu0 0.0
  %v978 = vand.u32 %v599, 4294901760
  %979 = vmatpush1.xpose.msra.mxu0 %v978
  %980 = vmatprep.subr.mxu0 0.0
  %v981 = vand.u32 %v600, 4294901760
  %982 = vmatpush1.xpose.msra.mxu0 %v981
  %983 = vmatprep.subr.mxu0 0.0
  %v984 = vand.u32 %v601, 4294901760
  %985 = vmatpush1.xpose.msra.mxu0 %v984
  %986 = vmatprep.subr.mxu0 0.0
  %v987 = vand.u32 %v602, 4294901760
  %988 = vmatpush1.xpose.msra.mxu0 %v987
  %989 = vmatprep.subr.mxu0 0.0
  %v990 = vand.u32 %v603, 4294901760
  %991 = vmatpush1.xpose.msra.mxu0 %v990
  %992 = vmatprep.subr.mxu0 0.0
  %v993 = vand.u32 %v604, 4294901760
  %994 = vmatpush1.xpose.msra.mxu0 %v993
  %995 = vmatprep.subr.mxu0 0.0
  %v996 = vand.u32 %v605, 4294901760
  %997 = vmatpush1.xpose.msra.mxu0 %v996
  %998 = vmatprep.subr.mxu0 0.0
  %v999 = vand.u32 %v606, 4294901760
  %1000 = vmatpush1.xpose.msra.mxu0 %v999
  %1001 = vmatprep.subr.mxu0 0.0
  %v1002 = vand.u32 %v607, 4294901760
  %1003 = vmatpush1.xpose.msra.mxu0 %v1002
  %1004 = vmatprep.subr.mxu0 0.0
  %v1005 = vand.u32 %v608, 4294901760
  %1006 = vmatpush1.xpose.msra.mxu0 %v1005
  %1007 = vmatprep.subr.mxu0 0.0
  %v1008 = vand.u32 %v609, 4294901760
  %1009 = vmatpush1.xpose.msra.mxu0 %v1008
  %1010 = vmatprep.subr.mxu0 0.0
  %v1011 = vand.u32 %v610, 4294901760
  %1012 = vmatpush1.xpose.msra.mxu0 %v1011
  %1013 = vmatprep.subr.mxu0 0.0
  %1014 = vmatpush1.xpose.msra.mxu0 0.0
  %1015 = vmatprep.subr.mxu0 0.0
  %1016 = vmatpush1.xpose.msra.mxu0 0.0
  %1017 = vmatprep.subr.mxu0 0.0
  %1018 = vmatpush1.xpose.msra.mxu0 0.0
  %1019 = vmatprep.subr.mxu0 0.0
  %1020 = vmatpush1.xpose.msra.mxu0 0.0
  %1021 = vmatprep.subr.mxu0 0.0
  %1022 = vmatpush1.xpose.msra.mxu0 0.0
  %1023 = vmatprep.subr.mxu0 0.0
  %1024 = vmatpush1.xpose.msra.mxu0 0.0
  %1025 = vmatprep.subr.mxu0 0.0
  %1026 = vmatpush1.xpose.msra.mxu0 0.0
  %1027 = vmatprep.subr.mxu0 0.0
  %1028 = vmatpush1.xpose.msra.mxu0 0.0
  %1029 = vmatprep.subr.mxu0 0.0
  %1030 = vmatpush1.xpose.msra.mxu0 0.0
  %1031 = vmatprep.subr.mxu0 0.0
  %1032 = vmatpush1.xpose.msra.mxu0 0.0
  %1033 = vmatprep.subr.mxu0 0.0
  %1034 = vmatpush1.xpose.msra.mxu0 0.0
  %1035 = vmatprep.subr.mxu0 0.0
  %1036 = vmatpush1.xpose.msra.mxu0 0.0
  %1037 = vmatprep.subr.mxu0 0.0
  %1038 = vmatpush1.xpose.msra.mxu0 0.0
  %1039 = vmatprep.subr.mxu0 0.0
  %1040 = vmatpush1.xpose.msra.mxu0 0.0
  %1041 = vmatprep.subr.mxu0 0.0
  %1042 = vmatpush1.xpose.msra.mxu0 0.0
  %1043 = vmatprep.subr.mxu0 0.0
  %1044 = vmatpush1.xpose.msra.mxu0 0.0
  %1045 = vmatprep.mubr.f32.mxu0 0.0
  %1046 = vmatmul.mubr.f32.gmra.mrb[0].mxu0 0.0
  %v1047 = vpop.f32.mrb[0].mxu0
  %v1048 = vadd.f32 %v962, %v1047
  %v1049 = vpop.f32.mrb[0].mxu0
  %1050 = vdwg.mxu0
  %1051 = vmatprep.subr.mxu0 0.0
  %v1052 = vand.u32 %v595, 4294901760
  %v1053 = vsub.f32 %v595, %v1052
  %v1054 = vand.u32 %v1053, 4294901760
  %1055 = vmatpush1.xpose.msra.mxu0 %v1054
  %1056 = vmatprep.subr.mxu0 0.0
  %v1057 = vand.u32 %v596, 4294901760
  %v1058 = vsub.f32 %v596, %v1057
  %v1059 = vand.u32 %v1058, 4294901760
  %1060 = vmatpush1.xpose.msra.mxu0 %v1059
  %1061 = vmatprep.subr.mxu0 0.0
  %v1062 = vand.u32 %v597, 4294901760
  %v1063 = vsub.f32 %v597, %v1062
  %v1064 = vand.u32 %v1063, 4294901760
  %1065 = vmatpush1.xpose.msra.mxu0 %v1064
  %1066 = vmatprep.subr.mxu0 0.0
  %v1067 = vand.u32 %v598, 4294901760
  %v1068 = vsub.f32 %v598, %v1067
  %v1069 = vand.u32 %v1068, 4294901760
  %1070 = vmatpush1.xpose.msra.mxu0 %v1069
  %1071 = vmatprep.subr.mxu0 0.0
  %v1072 = vand.u32 %v599, 4294901760
  %v1073 = vsub.f32 %v599, %v1072
  %v1074 = vand.u32 %v1073, 4294901760
  %1075 = vmatpush1.xpose.msra.mxu0 %v1074
  %1076 = vmatprep.subr.mxu0 0.0
  %v1077 = vand.u32 %v600, 4294901760
  %v1078 = vsub.f32 %v600, %v1077
  %v1079 = vand.u32 %v1078, 4294901760
  %1080 = vmatpush1.xpose.msra.mxu0 %v1079
  %1081 = vmatprep.subr.mxu0 0.0
  %v1082 = vand.u32 %v601, 4294901760
  %v1083 = vsub.f32 %v601, %v1082
  %v1084 = vand.u32 %v1083, 4294901760
  %1085 = vmatpush1.xpose.msra.mxu0 %v1084
  %1086 = vmatprep.subr.mxu0 0.0
  %v1087 = vand.u32 %v602, 4294901760
  %v1088 = vsub.f32 %v602, %v1087
  %v1089 = vand.u32 %v1088, 4294901760
  %1090 = vmatpush1.xpose.msra.mxu0 %v1089
  %1091 = vmatprep.subr.mxu0 0.0
  %v1092 = vand.u32 %v603, 4294901760
  %v1093 = vsub.f32 %v603, %v1092
  %v1094 = vand.u32 %v1093, 4294901760
  %1095 = vmatpush1.xpose.msra.mxu0 %v1094
  %1096 = vmatprep.subr.mxu0 0.0
  %v1097 = vand.u32 %v604, 4294901760
  %v1098 = vsub.f32 %v604, %v1097
  %v1099 = vand.u32 %v1098, 4294901760
  %1100 = vmatpush1.xpose.msra.mxu0 %v1099
  %1101 = vmatprep.subr.mxu0 0.0
  %v1102 = vand.u32 %v605, 4294901760
  %v1103 = vsub.f32 %v605, %v1102
  %v1104 = vand.u32 %v1103, 4294901760
  %1105 = vmatpush1.xpose.msra.mxu0 %v1104
  %1106 = vmatprep.subr.mxu0 0.0
  %v1107 = vand.u32 %v606, 4294901760
  %v1108 = vsub.f32 %v606, %v1107
  %v1109 = vand.u32 %v1108, 4294901760
  %1110 = vmatpush1.xpose.msra.mxu0 %v1109
  %1111 = vmatprep.subr.mxu0 0.0
  %v1112 = vand.u32 %v607, 4294901760
  %v1113 = vsub.f32 %v607, %v1112
  %v1114 = vand.u32 %v1113, 4294901760
  %1115 = vmatpush1.xpose.msra.mxu0 %v1114
  %1116 = vmatprep.subr.mxu0 0.0
  %v1117 = vand.u32 %v608, 4294901760
  %v1118 = vsub.f32 %v608, %v1117
  %v1119 = vand.u32 %v1118, 4294901760
  %1120 = vmatpush1.xpose.msra.mxu0 %v1119
  %1121 = vmatprep.subr.mxu0 0.0
  %v1122 = vand.u32 %v609, 4294901760
  %v1123 = vsub.f32 %v609, %v1122
  %v1124 = vand.u32 %v1123, 4294901760
  %1125 = vmatpush1.xpose.msra.mxu0 %v1124
  %1126 = vmatprep.subr.mxu0 0.0
  %v1127 = vand.u32 %v610, 4294901760
  %v1128 = vsub.f32 %v610, %v1127
  %v1129 = vand.u32 %v1128, 4294901760
  %1130 = vmatpush1.xpose.msra.mxu0 %v1129
  %1131 = vmatprep.subr.mxu0 0.0
  %1132 = vmatpush1.xpose.msra.mxu0 0.0
  %1133 = vmatprep.subr.mxu0 0.0
  %1134 = vmatpush1.xpose.msra.mxu0 0.0
  %1135 = vmatprep.subr.mxu0 0.0
  %1136 = vmatpush1.xpose.msra.mxu0 0.0
  %1137 = vmatprep.subr.mxu0 0.0
  %1138 = vmatpush1.xpose.msra.mxu0 0.0
  %1139 = vmatprep.subr.mxu0 0.0
  %1140 = vmatpush1.xpose.msra.mxu0 0.0
  %1141 = vmatprep.subr.mxu0 0.0
  %1142 = vmatpush1.xpose.msra.mxu0 0.0
  %1143 = vmatprep.subr.mxu0 0.0
  %1144 = vmatpush1.xpose.msra.mxu0 0.0
  %1145 = vmatprep.subr.mxu0 0.0
  %1146 = vmatpush1.xpose.msra.mxu0 0.0
  %1147 = vmatprep.subr.mxu0 0.0
  %1148 = vmatpush1.xpose.msra.mxu0 0.0
  %1149 = vmatprep.subr.mxu0 0.0
  %1150 = vmatpush1.xpose.msra.mxu0 0.0
  %1151 = vmatprep.subr.mxu0 0.0
  %1152 = vmatpush1.xpose.msra.mxu0 0.0
  %1153 = vmatprep.subr.mxu0 0.0
  %1154 = vmatpush1.xpose.msra.mxu0 0.0
  %1155 = vmatprep.subr.mxu0 0.0
  %1156 = vmatpush1.xpose.msra.mxu0 0.0
  %1157 = vmatprep.subr.mxu0 0.0
  %1158 = vmatpush1.xpose.msra.mxu0 0.0
  %1159 = vmatprep.subr.mxu0 0.0
  %1160 = vmatpush1.xpose.msra.mxu0 0.0
  %1161 = vmatprep.subr.mxu0 0.0
  %1162 = vmatpush1.xpose.msra.mxu0 0.0
  %1163 = vmatprep.mubr.f32.mxu0 0.0
  %1164 = vmatmul.mubr.f32.gmra.mrb[0].mxu0 1.0
  %v1165 = vpop.f32.mrb[0].mxu0
  %v1166 = vadd.f32 %v1048, %v1165
  %v1167 = vpop.f32.mrb[0].mxu0
  %1168 = vdwg.mxu0
  %1169 = vmatprep.subr.mxu0 0.0
  %v1170 = vand.u32 %v595, 4294901760
  %1171 = vmatpush1.xpose.msra.mxu0 %v1170
  %1172 = vmatprep.subr.mxu0 0.0
  %v1173 = vand.u32 %v596, 4294901760
  %1174 = vmatpush1.xpose.msra.mxu0 %v1173
  %1175 = vmatprep.subr.mxu0 0.0
  %v1176 = vand.u32 %v597, 4294901760
  %1177 = vmatpush1.xpose.msra.mxu0 %v1176
  %1178 = vmatprep.subr.mxu0 0.0
  %v1179 = vand.u32 %v598, 4294901760
  %1180 = vmatpush1.xpose.msra.mxu0 %v1179
  %1181 = vmatprep.subr.mxu0 0.0
  %v1182 = vand.u32 %v599, 4294901760
  %1183 = vmatpush1.xpose.msra.mxu0 %v1182
  %1184 = vmatprep.subr.mxu0 0.0
  %v1185 = vand.u32 %v600, 4294901760
  %1186 = vmatpush1.xpose.msra.mxu0 %v1185
  %1187 = vmatprep.subr.mxu0 0.0
  %v1188 = vand.u32 %v601, 4294901760
  %1189 = vmatpush1.xpose.msra.mxu0 %v1188
  %1190 = vmatprep.subr.mxu0 0.0
  %v1191 = vand.u32 %v602, 4294901760
  %1192 = vmatpush1.xpose.msra.mxu0 %v1191
  %1193 = vmatprep.subr.mxu0 0.0
  %v1194 = vand.u32 %v603, 4294901760
  %1195 = vmatpush1.xpose.msra.mxu0 %v1194
  %1196 = vmatprep.subr.mxu0 0.0
  %v1197 = vand.u32 %v604, 4294901760
  %1198 = vmatpush1.xpose.msra.mxu0 %v1197
  %1199 = vmatprep.subr.mxu0 0.0
  %v1200 = vand.u32 %v605, 4294901760
  %1201 = vmatpush1.xpose.msra.mxu0 %v1200
  %1202 = vmatprep.subr.mxu0 0.0
  %v1203 = vand.u32 %v606, 4294901760
  %1204 = vmatpush1.xpose.msra.mxu0 %v1203
  %1205 = vmatprep.subr.mxu0 0.0
  %v1206 = vand.u32 %v607, 4294901760
  %1207 = vmatpush1.xpose.msra.mxu0 %v1206
  %1208 = vmatprep.subr.mxu0 0.0
  %v1209 = vand.u32 %v608, 4294901760
  %1210 = vmatpush1.xpose.msra.mxu0 %v1209
  %1211 = vmatprep.subr.mxu0 0.0
  %v1212 = vand.u32 %v609, 4294901760
  %1213 = vmatpush1.xpose.msra.mxu0 %v1212
  %1214 = vmatprep.subr.mxu0 0.0
  %v1215 = vand.u32 %v610, 4294901760
  %1216 = vmatpush1.xpose.msra.mxu0 %v1215
  %1217 = vmatprep.subr.mxu0 0.0
  %1218 = vmatpush1.xpose.msra.mxu0 0.0
  %1219 = vmatprep.subr.mxu0 0.0
  %1220 = vmatpush1.xpose.msra.mxu0 0.0
  %1221 = vmatprep.subr.mxu0 0.0
  %1222 = vmatpush1.xpose.msra.mxu0 0.0
  %1223 = vmatprep.subr.mxu0 0.0
  %1224 = vmatpush1.xpose.msra.mxu0 0.0
  %1225 = vmatprep.subr.mxu0 0.0
  %1226 = vmatpush1.xpose.msra.mxu0 0.0
  %1227 = vmatprep.subr.mxu0 0.0
  %1228 = vmatpush1.xpose.msra.mxu0 0.0
  %1229 = vmatprep.subr.mxu0 0.0
  %1230 = vmatpush1.xpose.msra.mxu0 0.0
  %1231 = vmatprep.subr.mxu0 0.0
  %1232 = vmatpush1.xpose.msra.mxu0 0.0
  %1233 = vmatprep.subr.mxu0 0.0
  %1234 = vmatpush1.xpose.msra.mxu0 0.0
  %1235 = vmatprep.subr.mxu0 0.0
  %1236 = vmatpush1.xpose.msra.mxu0 0.0
  %1237 = vmatprep.subr.mxu0 0.0
  %1238 = vmatpush1.xpose.msra.mxu0 0.0
  %1239 = vmatprep.subr.mxu0 0.0
  %1240 = vmatpush1.xpose.msra.mxu0 0.0
  %1241 = vmatprep.subr.mxu0 0.0
  %1242 = vmatpush1.xpose.msra.mxu0 0.0
  %1243 = vmatprep.subr.mxu0 0.0
  %1244 = vmatpush1.xpose.msra.mxu0 0.0
  %1245 = vmatprep.subr.mxu0 0.0
  %1246 = vmatpush1.xpose.msra.mxu0 0.0
  %1247 = vmatprep.subr.mxu0 0.0
  %1248 = vmatpush1.xpose.msra.mxu0 0.0
  %1249 = vmatprep.mubr.f32.mxu0 0.0
  %1250 = vmatmul.mubr.f32.gmra.mrb[0].mxu0 1.0
  %v1251 = vpop.f32.mrb[0].mxu0
  %v1252 = vadd.f32 %v1166, %v1251
  %v1253 = vpop.f32.mrb[0].mxu0
  %1254 = vdwg.mxu0
  %1255 = vmatprep.subr.mxu0 0.0
  %v1256 = vand.u32 %v611, 4294901760
  %1257 = vmatpush1.xpose.msra.mxu0 %v1256
  %1258 = vmatprep.subr.mxu0 0.0
  %v1259 = vand.u32 %v612, 4294901760
  %1260 = vmatpush1.xpose.msra.mxu0 %v1259
  %1261 = vmatprep.subr.mxu0 0.0
  %v1262 = vand.u32 %v613, 4294901760
  %1263 = vmatpush1.xpose.msra.mxu0 %v1262
  %1264 = vmatprep.subr.mxu0 0.0
  %v1265 = vand.u32 %v614, 4294901760
  %1266 = vmatpush1.xpose.msra.mxu0 %v1265
  %1267 = vmatprep.subr.mxu0 0.0
  %v1268 = vand.u32 %v615, 4294901760
  %1269 = vmatpush1.xpose.msra.mxu0 %v1268
  %1270 = vmatprep.subr.mxu0 0.0
  %v1271 = vand.u32 %v616, 4294901760
  %1272 = vmatpush1.xpose.msra.mxu0 %v1271
  %1273 = vmatprep.subr.mxu0 0.0
  %v1274 = vand.u32 %v617, 4294901760
  %1275 = vmatpush1.xpose.msra.mxu0 %v1274
  %1276 = vmatprep.subr.mxu0 0.0
  %v1277 = vand.u32 %v618, 4294901760
  %1278 = vmatpush1.xpose.msra.mxu0 %v1277
  %1279 = vmatprep.subr.mxu0 0.0
  %v1280 = vand.u32 %v619, 4294901760
  %1281 = vmatpush1.xpose.msra.mxu0 %v1280
  %1282 = vmatprep.subr.mxu0 0.0
  %v1283 = vand.u32 %v620, 4294901760
  %1284 = vmatpush1.xpose.msra.mxu0 %v1283
  %1285 = vmatprep.subr.mxu0 0.0
  %v1286 = vand.u32 %v621, 4294901760
  %1287 = vmatpush1.xpose.msra.mxu0 %v1286
  %1288 = vmatprep.subr.mxu0 0.0
  %v1289 = vand.u32 %v622, 4294901760
  %1290 = vmatpush1.xpose.msra.mxu0 %v1289
  %1291 = vmatprep.subr.mxu0 0.0
  %v1292 = vand.u32 %v623, 4294901760
  %1293 = vmatpush1.xpose.msra.mxu0 %v1292
  %1294 = vmatprep.subr.mxu0 0.0
  %v1295 = vand.u32 %v624, 4294901760
  %1296 = vmatpush1.xpose.msra.mxu0 %v1295
  %1297 = vmatprep.subr.mxu0 0.0
  %v1298 = vand.u32 %v625, 4294901760
  %1299 = vmatpush1.xpose.msra.mxu0 %v1298
  %1300 = vmatprep.subr.mxu0 0.0
  %v1301 = vand.u32 %v626, 4294901760
  %1302 = vmatpush1.xpose.msra.mxu0 %v1301
  %1303 = vmatprep.subr.mxu0 0.0
  %1304 = vmatpush1.xpose.msra.mxu0 0.0
  %1305 = vmatprep.subr.mxu0 0.0
  %1306 = vmatpush1.xpose.msra.mxu0 0.0
  %1307 = vmatprep.subr.mxu0 0.0
  %1308 = vmatpush1.xpose.msra.mxu0 0.0
  %1309 = vmatprep.subr.mxu0 0.0
  %1310 = vmatpush1.xpose.msra.mxu0 0.0
  %1311 = vmatprep.subr.mxu0 0.0
  %1312 = vmatpush1.xpose.msra.mxu0 0.0
  %1313 = vmatprep.subr.mxu0 0.0
  %1314 = vmatpush1.xpose.msra.mxu0 0.0
  %1315 = vmatprep.subr.mxu0 0.0
  %1316 = vmatpush1.xpose.msra.mxu0 0.0
  %1317 = vmatprep.subr.mxu0 0.0
  %1318 = vmatpush1.xpose.msra.mxu0 0.0
  %1319 = vmatprep.subr.mxu0 0.0
  %1320 = vmatpush1.xpose.msra.mxu0 0.0
  %1321 = vmatprep.subr.mxu0 0.0
  %1322 = vmatpush1.xpose.msra.mxu0 0.0
  %1323 = vmatprep.subr.mxu0 0.0
  %1324 = vmatpush1.xpose.msra.mxu0 0.0
  %1325 = vmatprep.subr.mxu0 0.0
  %1326 = vmatpush1.xpose.msra.mxu0 0.0
  %1327 = vmatprep.subr.mxu0 0.0
  %1328 = vmatpush1.xpose.msra.mxu0 0.0
  %1329 = vmatprep.subr.mxu0 0.0
  %1330 = vmatpush1.xpose.msra.mxu0 0.0
  %1331 = vmatprep.subr.mxu0 0.0
  %1332 = vmatpush1.xpose.msra.mxu0 0.0
  %1333 = vmatprep.subr.mxu0 0.0
  %1334 = vmatpush1.xpose.msra.mxu0 0.0
  %1335 = vmatprep.mubr.f32.mxu0 0.0
  %1336 = vmatmul.mubr.f32.gmra.mrb[0].mxu0 0.0
  %v1337 = vpop.f32.mrb[0].mxu0
  %v1338 = vadd.f32 0.0, %v1337
  %v1339 = vpop.f32.mrb[0].mxu0
  %1340 = vdwg.mxu0
  %1341 = vmatprep.subr.mxu0 0.0
  %v1342 = vand.u32 %v611, 4294901760
  %v1343 = vsub.f32 %v611, %v1342
  %v1344 = vand.u32 %v1343, 4294901760
  %v1345 = vsub.f32 %v1343, %v1344
  %v1346 = vand.u32 %v1345, 4294901760
  %1347 = vmatpush1.xpose.msra.mxu0 %v1346
  %1348 = vmatprep.subr.mxu0 0.0
  %v1349 = vand.u32 %v612, 4294901760
  %v1350 = vsub.f32 %v612, %v1349
  %v1351 = vand.u32 %v1350, 4294901760
  %v1352 = vsub.f32 %v1350, %v1351
  %v1353 = vand.u32 %v1352, 4294901760
  %1354 = vmatpush1.xpose.msra.mxu0 %v1353
  %1355 = vmatprep.subr.mxu0 0.0
  %v1356 = vand.u32 %v613, 4294901760
  %v1357 = vsub.f32 %v613, %v1356
  %v1358 = vand.u32 %v1357, 4294901760
  %v1359 = vsub.f32 %v1357, %v1358
  %v1360 = vand.u32 %v1359, 4294901760
  %1361 = vmatpush1.xpose.msra.mxu0 %v1360
  %1362 = vmatprep.subr.mxu0 0.0
  %v1363 = vand.u32 %v614, 4294901760
  %v1364 = vsub.f32 %v614, %v1363
  %v1365 = vand.u32 %v1364, 4294901760
  %v1366 = vsub.f32 %v1364, %v1365
  %v1367 = vand.u32 %v1366, 4294901760
  %1368 = vmatpush1.xpose.msra.mxu0 %v1367
  %1369 = vmatprep.subr.mxu0 0.0
  %v1370 = vand.u32 %v615, 4294901760
  %v1371 = vsub.f32 %v615, %v1370
  %v1372 = vand.u32 %v1371, 4294901760
  %v1373 = vsub.f32 %v1371, %v1372
  %v1374 = vand.u32 %v1373, 4294901760
  %1375 = vmatpush1.xpose.msra.mxu0 %v1374
  %1376 = vmatprep.subr.mxu0 0.0
  %v1377 = vand.u32 %v616, 4294901760
  %v1378 = vsub.f32 %v616, %v1377
  %v1379 = vand.u32 %v1378, 4294901760
  %v1380 = vsub.f32 %v1378, %v1379
  %v1381 = vand.u32 %v1380, 4294901760
  %1382 = vmatpush1.xpose.msra.mxu0 %v1381
  %1383 = vmatprep.subr.mxu0 0.0
  %v1384 = vand.u32 %v617, 4294901760
  %v1385 = vsub.f32 %v617, %v1384
  %v1386 = vand.u32 %v1385, 4294901760
  %v1387 = vsub.f32 %v1385, %v1386
  %v1388 = vand.u32 %v1387, 4294901760
  %1389 = vmatpush1.xpose.msra.mxu0 %v1388
  %1390 = vmatprep.subr.mxu0 0.0
  %v1391 = vand.u32 %v618, 4294901760
  %v1392 = vsub.f32 %v618, %v1391
  %v1393 = vand.u32 %v1392, 4294901760
  %v1394 = vsub.f32 %v1392, %v1393
  %v1395 = vand.u32 %v1394, 4294901760
  %1396 = vmatpush1.xpose.msra.mxu0 %v1395
  %1397 = vmatprep.subr.mxu0 0.0
  %v1398 = vand.u32 %v619, 4294901760
  %v1399 = vsub.f32 %v619, %v1398
  %v1400 = vand.u32 %v1399, 4294901760
  %v1401 = vsub.f32 %v1399, %v1400
  %v1402 = vand.u32 %v1401, 4294901760
  %1403 = vmatpush1.xpose.msra.mxu0 %v1402
  %1404 = vmatprep.subr.mxu0 0.0
  %v1405 = vand.u32 %v620, 4294901760
  %v1406 = vsub.f32 %v620, %v1405
  %v1407 = vand.u32 %v1406, 4294901760
  %v1408 = vsub.f32 %v1406, %v1407
  %v1409 = vand.u32 %v1408, 4294901760
  %1410 = vmatpush1.xpose.msra.mxu0 %v1409
  %1411 = vmatprep.subr.mxu0 0.0
  %v1412 = vand.u32 %v621, 4294901760
  %v1413 = vsub.f32 %v621, %v1412
  %v1414 = vand.u32 %v1413, 4294901760
  %v1415 = vsub.f32 %v1413, %v1414
  %v1416 = vand.u32 %v1415, 4294901760
  %1417 = vmatpush1.xpose.msra.mxu0 %v1416
  %1418 = vmatprep.subr.mxu0 0.0
  %v1419 = vand.u32 %v622, 4294901760
  %v1420 = vsub.f32 %v622, %v1419
  %v1421 = vand.u32 %v1420, 4294901760
  %v1422 = vsub.f32 %v1420, %v1421
  %v1423 = vand.u32 %v1422, 4294901760
  %1424 = vmatpush1.xpose.msra.mxu0 %v1423
  %1425 = vmatprep.subr.mxu0 0.0
  %v1426 = vand.u32 %v623, 4294901760
  %v1427 = vsub.f32 %v623, %v1426
  %v1428 = vand.u32 %v1427, 4294901760
  %v1429 = vsub.f32 %v1427, %v1428
  %v1430 = vand.u32 %v1429, 4294901760
  %1431 = vmatpush1.xpose.msra.mxu0 %v1430
  %1432 = vmatprep.subr.mxu0 0.0
  %v1433 = vand.u32 %v624, 4294901760
  %v1434 = vsub.f32 %v624, %v1433
  %v1435 = vand.u32 %v1434, 4294901760
  %v1436 = vsub.f32 %v1434, %v1435
  %v1437 = vand.u32 %v1436, 4294901760
  %1438 = vmatpush1.xpose.msra.mxu0 %v1437
  %1439 = vmatprep.subr.mxu0 0.0
  %v1440 = vand.u32 %v625, 4294901760
  %v1441 = vsub.f32 %v625, %v1440
  %v1442 = vand.u32 %v1441, 4294901760
  %v1443 = vsub.f32 %v1441, %v1442
  %v1444 = vand.u32 %v1443, 4294901760
  %1445 = vmatpush1.xpose.msra.mxu0 %v1444
  %1446 = vmatprep.subr.mxu0 0.0
  %v1447 = vand.u32 %v626, 4294901760
  %v1448 = vsub.f32 %v626, %v1447
  %v1449 = vand.u32 %v1448, 4294901760
  %v1450 = vsub.f32 %v1448, %v1449
  %v1451 = vand.u32 %v1450, 4294901760
  %1452 = vmatpush1.xpose.msra.mxu0 %v1451
  %1453 = vmatprep.subr.mxu0 0.0
  %1454 = vmatpush1.xpose.msra.mxu0 0.0
  %1455 = vmatprep.subr.mxu0 0.0
  %1456 = vmatpush1.xpose.msra.mxu0 0.0
  %1457 = vmatprep.subr.mxu0 0.0
  %1458 = vmatpush1.xpose.msra.mxu0 0.0
  %1459 = vmatprep.subr.mxu0 0.0
  %1460 = vmatpush1.xpose.msra.mxu0 0.0
  %1461 = vmatprep.subr.mxu0 0.0
  %1462 = vmatpush1.xpose.msra.mxu0 0.0
  %1463 = vmatprep.subr.mxu0 0.0
  %1464 = vmatpush1.xpose.msra.mxu0 0.0
  %1465 = vmatprep.subr.mxu0 0.0
  %1466 = vmatpush1.xpose.msra.mxu0 0.0
  %1467 = vmatprep.subr.mxu0 0.0
  %1468 = vmatpush1.xpose.msra.mxu0 0.0
  %1469 = vmatprep.subr.mxu0 0.0
  %1470 = vmatpush1.xpose.msra.mxu0 0.0
  %1471 = vmatprep.subr.mxu0 0.0
  %1472 = vmatpush1.xpose.msra.mxu0 0.0
  %1473 = vmatprep.subr.mxu0 0.0
  %1474 = vmatpush1.xpose.msra.mxu0 0.0
  %1475 = vmatprep.subr.mxu0 0.0
  %1476 = vmatpush1.xpose.msra.mxu0 0.0
  %1477 = vmatprep.subr.mxu0 0.0
  %1478 = vmatpush1.xpose.msra.mxu0 0.0
  %1479 = vmatprep.subr.mxu0 0.0
  %1480 = vmatpush1.xpose.msra.mxu0 0.0
  %1481 = vmatprep.subr.mxu0 0.0
  %1482 = vmatpush1.xpose.msra.mxu0 0.0
  %1483 = vmatprep.subr.mxu0 0.0
  %1484 = vmatpush1.xpose.msra.mxu0 0.0
  %1485 = vmatprep.mubr.f32.mxu0 0.0
  %1486 = vmatmul.mubr.f32.gmra.mrb[0].mxu0 1.0
  %v1487 = vpop.f32.mrb[0].mxu0
  %v1488 = vadd.f32 %v1338, %v1487
  %v1489 = vpop.f32.mrb[0].mxu0
  %1490 = vdwg.mxu0
  %1491 = vmatprep.subr.mxu0 0.0
  %v1492 = vand.u32 %v611, 4294901760
  %v1493 = vsub.f32 %v611, %v1492
  %1494 = vmatpush1.xpose.msra.mxu0 %v1493
  %1495 = vmatprep.subr.mxu0 0.0
  %v1496 = vand.u32 %v612, 4294901760
  %v1497 = vsub.f32 %v612, %v1496
  %1498 = vmatpush1.xpose.msra.mxu0 %v1497
  %1499 = vmatprep.subr.mxu0 0.0
  %v1500 = vand.u32 %v613, 4294901760
  %v1501 = vsub.f32 %v613, %v1500
  %1502 = vmatpush1.xpose.msra.mxu0 %v1501
  %1503 = vmatprep.subr.mxu0 0.0
  %v1504 = vand.u32 %v614, 4294901760
  %v1505 = vsub.f32 %v614, %v1504
  %1506 = vmatpush1.xpose.msra.mxu0 %v1505
  %1507 = vmatprep.subr.mxu0 0.0
  %v1508 = vand.u32 %v615, 4294901760
  %v1509 = vsub.f32 %v615, %v1508
  %1510 = vmatpush1.xpose.msra.mxu0 %v1509
  %1511 = vmatprep.subr.mxu0 0.0
  %v1512 = vand.u32 %v616, 4294901760
  %v1513 = vsub.f32 %v616, %v1512
  %1514 = vmatpush1.xpose.msra.mxu0 %v1513
  %1515 = vmatprep.subr.mxu0 0.0
  %v1516 = vand.u32 %v617, 4294901760
  %v1517 = vsub.f32 %v617, %v1516
  %1518 = vmatpush1.xpose.msra.mxu0 %v1517
  %1519 = vmatprep.subr.mxu0 0.0
  %v1520 = vand.u32 %v618, 4294901760
  %v1521 = vsub.f32 %v618, %v1520
  %1522 = vmatpush1.xpose.msra.mxu0 %v1521
  %1523 = vmatprep.subr.mxu0 0.0
  %v1524 = vand.u32 %v619, 4294901760
  %v1525 = vsub.f32 %v619, %v1524
  %1526 = vmatpush1.xpose.msra.mxu0 %v1525
  %1527 = vmatprep.subr.mxu0 0.0
  %v1528 = vand.u32 %v620, 4294901760
  %v1529 = vsub.f32 %v620, %v1528
  %1530 = vmatpush1.xpose.msra.mxu0 %v1529
  %1531 = vmatprep.subr.mxu0 0.0
  %v1532 = vand.u32 %v621, 4294901760
  %v1533 = vsub.f32 %v621, %v1532
  %1534 = vmatpush1.xpose.msra.mxu0 %v1533
  %1535 = vmatprep.subr.mxu0 0.0
  %v1536 = vand.u32 %v622, 4294901760
  %v1537 = vsub.f32 %v622, %v1536
  %1538 = vmatpush1.xpose.msra.mxu0 %v1537
  %1539 = vmatprep.subr.mxu0 0.0
  %v1540 = vand.u32 %v623, 4294901760
  %v1541 = vsub.f32 %v623, %v1540
  %1542 = vmatpush1.xpose.msra.mxu0 %v1541
  %1543 = vmatprep.subr.mxu0 0.0
  %v1544 = vand.u32 %v624, 4294901760
  %v1545 = vsub.f32 %v624, %v1544
  %1546 = vmatpush1.xpose.msra.mxu0 %v1545
  %1547 = vmatprep.subr.mxu0 0.0
  %v1548 = vand.u32 %v625, 4294901760
  %v1549 = vsub.f32 %v625, %v1548
  %1550 = vmatpush1.xpose.msra.mxu0 %v1549
  %1551 = vmatprep.subr.mxu0 0.0
  %v1552 = vand.u32 %v626, 4294901760
  %v1553 = vsub.f32 %v626, %v1552
  %1554 = vmatpush1.xpose.msra.mxu0 %v1553
  %1555 = vmatprep.subr.mxu0 0.0
  %1556 = vmatpush1.xpose.msra.mxu0 0.0
  %1557 = vmatprep.subr.mxu0 0.0
  %1558 = vmatpush1.xpose.msra.mxu0 0.0
  %1559 = vmatprep.subr.mxu0 0.0
  %1560 = vmatpush1.xpose.msra.mxu0 0.0
  %1561 = vmatprep.subr.mxu0 0.0
  %1562 = vmatpush1.xpose.msra.mxu0 0.0
  %1563 = vmatprep.subr.mxu0 0.0
  %1564 = vmatpush1.xpose.msra.mxu0 0.0
  %1565 = vmatprep.subr.mxu0 0.0
  %1566 = vmatpush1.xpose.msra.mxu0 0.0
  %1567 = vmatprep.subr.mxu0 0.0
  %1568 = vmatpush1.xpose.msra.mxu0 0.0
  %1569 = vmatprep.subr.mxu0 0.0
  %1570 = vmatpush1.xpose.msra.mxu0 0.0
  %1571 = vmatprep.subr.mxu0 0.0
  %1572 = vmatpush1.xpose.msra.mxu0 0.0
  %1573 = vmatprep.subr.mxu0 0.0
  %1574 = vmatpush1.xpose.msra.mxu0 0.0
  %1575 = vmatprep.subr.mxu0 0.0
  %1576 = vmatpush1.xpose.msra.mxu0 0.0
  %1577 = vmatprep.subr.mxu0 0.0
  %1578 = vmatpush1.xpose.msra.mxu0 0.0
  %1579 = vmatprep.subr.mxu0 0.0
  %1580 = vmatpush1.xpose.msra.mxu0 0.0
  %1581 = vmatprep.subr.mxu0 0.0
  %1582 = vmatpush1.xpose.msra.mxu0 0.0
  %1583 = vmatprep.subr.mxu0 0.0
  %1584 = vmatpush1.xpose.msra.mxu0 0.0
  %1585 = vmatprep.subr.mxu0 0.0
  %1586 = vmatpush1.xpose.msra.mxu0 0.0
  %1587 = vmatprep.mubr.f32.mxu0 0.0
  %1588 = vmatmul.mubr.f32.gmra.mrb[0].mxu0 0.0
  %v1589 = vpop.f32.mrb[0].mxu0
  %v1590 = vadd.f32 %v1488, %v1589
  %v1591 = vpop.f32.mrb[0].mxu0
  %1592 = vdwg.mxu0
  %1593 = vmatprep.subr.mxu0 0.0
  %v1594 = vand.u32 %v611, 4294901760
  %1595 = vmatpush1.xpose.msra.mxu0 %v1594
  %1596 = vmatprep.subr.mxu0 0.0
  %v1597 = vand.u32 %v612, 4294901760
  %1598 = vmatpush1.xpose.msra.mxu0 %v1597
  %1599 = vmatprep.subr.mxu0 0.0
  %v1600 = vand.u32 %v613, 4294901760
  %1601 = vmatpush1.xpose.msra.mxu0 %v1600
  %1602 = vmatprep.subr.mxu0 0.0
  %v1603 = vand.u32 %v614, 4294901760
  %1604 = vmatpush1.xpose.msra.mxu0 %v1603
  %1605 = vmatprep.subr.mxu0 0.0
  %v1606 = vand.u32 %v615, 4294901760
  %1607 = vmatpush1.xpose.msra.mxu0 %v1606
  %1608 = vmatprep.subr.mxu0 0.0
  %v1609 = vand.u32 %v616, 4294901760
  %1610 = vmatpush1.xpose.msra.mxu0 %v1609
  %1611 = vmatprep.subr.mxu0 0.0
  %v1612 = vand.u32 %v617, 4294901760
  %1613 = vmatpush1.xpose.msra.mxu0 %v1612
  %1614 = vmatprep.subr.mxu0 0.0
  %v1615 = vand.u32 %v618, 4294901760
  %1616 = vmatpush1.xpose.msra.mxu0 %v1615
  %1617 = vmatprep.subr.mxu0 0.0
  %v1618 = vand.u32 %v619, 4294901760
  %1619 = vmatpush1.xpose.msra.mxu0 %v1618
  %1620 = vmatprep.subr.mxu0 0.0
  %v1621 = vand.u32 %v620, 4294901760
  %1622 = vmatpush1.xpose.msra.mxu0 %v1621
  %1623 = vmatprep.subr.mxu0 0.0
  %v1624 = vand.u32 %v621, 4294901760
  %1625 = vmatpush1.xpose.msra.mxu0 %v1624
  %1626 = vmatprep.subr.mxu0 0.0
  %v1627 = vand.u32 %v622, 4294901760
  %1628 = vmatpush1.xpose.msra.mxu0 %v1627
  %1629 = vmatprep.subr.mxu0 0.0
  %v1630 = vand.u32 %v623, 4294901760
  %1631 = vmatpush1.xpose.msra.mxu0 %v1630
  %1632 = vmatprep.subr.mxu0 0.0
  %v1633 = vand.u32 %v624, 4294901760
  %1634 = vmatpush1.xpose.msra.mxu0 %v1633
  %1635 = vmatprep.subr.mxu0 0.0
  %v1636 = vand.u32 %v625, 4294901760
  %1637 = vmatpush1.xpose.msra.mxu0 %v1636
  %1638 = vmatprep.subr.mxu0 0.0
  %v1639 = vand.u32 %v626, 4294901760
  %1640 = vmatpush1.xpose.msra.mxu0 %v1639
  %1641 = vmatprep.subr.mxu0 0.0
  %1642 = vmatpush1.xpose.msra.mxu0 0.0
  %1643 = vmatprep.subr.mxu0 0.0
  %1644 = vmatpush1.xpose.msra.mxu0 0.0
  %1645 = vmatprep.subr.mxu0 0.0
  %1646 = vmatpush1.xpose.msra.mxu0 0.0
  %1647 = vmatprep.subr.mxu0 0.0
  %1648 = vmatpush1.xpose.msra.mxu0 0.0
  %1649 = vmatprep.subr.mxu0 0.0
  %1650 = vmatpush1.xpose.msra.mxu0 0.0
  %1651 = vmatprep.subr.mxu0 0.0
  %1652 = vmatpush1.xpose.msra.mxu0 0.0
  %1653 = vmatprep.subr.mxu0 0.0
  %1654 = vmatpush1.xpose.msra.mxu0 0.0
  %1655 = vmatprep.subr.mxu0 0.0
  %1656 = vmatpush1.xpose.msra.mxu0 0.0
  %1657 = vmatprep.subr.mxu0 0.0
  %1658 = vmatpush1.xpose.msra.mxu0 0.0
  %1659 = vmatprep.subr.mxu0 0.0
  %1660 = vmatpush1.xpose.msra.mxu0 0.0
  %1661 = vmatprep.subr.mxu0 0.0
  %1662 = vmatpush1.xpose.msra.mxu0 0.0
  %1663 = vmatprep.subr.mxu0 0.0
  %1664 = vmatpush1.xpose.msra.mxu0 0.0
  %1665 = vmatprep.subr.mxu0 0.0
  %1666 = vmatpush1.xpose.msra.mxu0 0.0
  %1667 = vmatprep.subr.mxu0 0.0
  %1668 = vmatpush1.xpose.msra.mxu0 0.0
  %1669 = vmatprep.subr.mxu0 0.0
  %1670 = vmatpush1.xpose.msra.mxu0 0.0
  %1671 = vmatprep.subr.mxu0 0.0
  %1672 = vmatpush1.xpose.msra.mxu0 0.0
  %1673 = vmatprep.mubr.f32.mxu0 0.0
  %1674 = vmatmul.mubr.f32.gmra.mrb[0].mxu0 0.0
  %v1675 = vpop.f32.mrb[0].mxu0
  %v1676 = vadd.f32 %v1590, %v1675
  %v1677 = vpop.f32.mrb[0].mxu0
  %1678 = vdwg.mxu0
  %1679 = vmatprep.subr.mxu0 0.0
  %v1680 = vand.u32 %v611, 4294901760
  %v1681 = vsub.f32 %v611, %v1680
  %v1682 = vand.u32 %v1681, 4294901760
  %1683 = vmatpush1.xpose.msra.mxu0 %v1682
  %1684 = vmatprep.subr.mxu0 0.0
  %v1685 = vand.u32 %v612, 4294901760
  %v1686 = vsub.f32 %v612, %v1685
  %v1687 = vand.u32 %v1686, 4294901760
  %1688 = vmatpush1.xpose.msra.mxu0 %v1687
  %1689 = vmatprep.subr.mxu0 0.0
  %v1690 = vand.u32 %v613, 4294901760
  %v1691 = vsub.f32 %v613, %v1690
  %v1692 = vand.u32 %v1691, 4294901760
  %1693 = vmatpush1.xpose.msra.mxu0 %v1692
  %1694 = vmatprep.subr.mxu0 0.0
  %v1695 = vand.u32 %v614, 4294901760
  %v1696 = vsub.f32 %v614, %v1695
  %v1697 = vand.u32 %v1696, 4294901760
  %1698 = vmatpush1.xpose.msra.mxu0 %v1697
  %1699 = vmatprep.subr.mxu0 0.0
  %v1700 = vand.u32 %v615, 4294901760
  %v1701 = vsub.f32 %v615, %v1700
  %v1702 = vand.u32 %v1701, 4294901760
  %1703 = vmatpush1.xpose.msra.mxu0 %v1702
  %1704 = vmatprep.subr.mxu0 0.0
  %v1705 = vand.u32 %v616, 4294901760
  %v1706 = vsub.f32 %v616, %v1705
  %v1707 = vand.u32 %v1706, 4294901760
  %1708 = vmatpush1.xpose.msra.mxu0 %v1707
  %1709 = vmatprep.subr.mxu0 0.0
  %v1710 = vand.u32 %v617, 4294901760
  %v1711 = vsub.f32 %v617, %v1710
  %v1712 = vand.u32 %v1711, 4294901760
  %1713 = vmatpush1.xpose.msra.mxu0 %v1712
  %1714 = vmatprep.subr.mxu0 0.0
  %v1715 = vand.u32 %v618, 4294901760
  %v1716 = vsub.f32 %v618, %v1715
  %v1717 = vand.u32 %v1716, 4294901760
  %1718 = vmatpush1.xpose.msra.mxu0 %v1717
  %1719 = vmatprep.subr.mxu0 0.0
  %v1720 = vand.u32 %v619, 4294901760
  %v1721 = vsub.f32 %v619, %v1720
  %v1722 = vand.u32 %v1721, 4294901760
  %1723 = vmatpush1.xpose.msra.mxu0 %v1722
  %1724 = vmatprep.subr.mxu0 0.0
  %v1725 = vand.u32 %v620, 4294901760
  %v1726 = vsub.f32 %v620, %v1725
  %v1727 = vand.u32 %v1726, 4294901760
  %1728 = vmatpush1.xpose.msra.mxu0 %v1727
  %1729 = vmatprep.subr.mxu0 0.0
  %v1730 = vand.u32 %v621, 4294901760
  %v1731 = vsub.f32 %v621, %v1730
  %v1732 = vand.u32 %v1731, 4294901760
  %1733 = vmatpush1.xpose.msra.mxu0 %v1732
  %1734 = vmatprep.subr.mxu0 0.0
  %v1735 = vand.u32 %v622, 4294901760
  %v1736 = vsub.f32 %v622, %v1735
  %v1737 = vand.u32 %v1736, 4294901760
  %1738 = vmatpush1.xpose.msra.mxu0 %v1737
  %1739 = vmatprep.subr.mxu0 0.0
  %v1740 = vand.u32 %v623, 4294901760
  %v1741 = vsub.f32 %v623, %v1740
  %v1742 = vand.u32 %v1741, 4294901760
  %1743 = vmatpush1.xpose.msra.mxu0 %v1742
  %1744 = vmatprep.subr.mxu0 0.0
  %v1745 = vand.u32 %v624, 4294901760
  %v1746 = vsub.f32 %v624, %v1745
  %v1747 = vand.u32 %v1746, 4294901760
  %1748 = vmatpush1.xpose.msra.mxu0 %v1747
  %1749 = vmatprep.subr.mxu0 0.0
  %v1750 = vand.u32 %v625, 4294901760
  %v1751 = vsub.f32 %v625, %v1750
  %v1752 = vand.u32 %v1751, 4294901760
  %1753 = vmatpush1.xpose.msra.mxu0 %v1752
  %1754 = vmatprep.subr.mxu0 0.0
  %v1755 = vand.u32 %v626, 4294901760
  %v1756 = vsub.f32 %v626, %v1755
  %v1757 = vand.u32 %v1756, 4294901760
  %1758 = vmatpush1.xpose.msra.mxu0 %v1757
  %1759 = vmatprep.subr.mxu0 0.0
  %1760 = vmatpush1.xpose.msra.mxu0 0.0
  %1761 = vmatprep.subr.mxu0 0.0
  %1762 = vmatpush1.xpose.msra.mxu0 0.0
  %1763 = vmatprep.subr.mxu0 0.0
  %1764 = vmatpush1.xpose.msra.mxu0 0.0
  %1765 = vmatprep.subr.mxu0 0.0
  %1766 = vmatpush1.xpose.msra.mxu0 0.0
  %1767 = vmatprep.subr.mxu0 0.0
  %1768 = vmatpush1.xpose.msra.mxu0 0.0
  %1769 = vmatprep.subr.mxu0 0.0
  %1770 = vmatpush1.xpose.msra.mxu0 0.0
  %1771 = vmatprep.subr.mxu0 0.0
  %1772 = vmatpush1.xpose.msra.mxu0 0.0
  %1773 = vmatprep.subr.mxu0 0.0
  %1774 = vmatpush1.xpose.msra.mxu0 0.0
  %1775 = vmatprep.subr.mxu0 0.0
  %1776 = vmatpush1.xpose.msra.mxu0 0.0
  %1777 = vmatprep.subr.mxu0 0.0
  %1778 = vmatpush1.xpose.msra.mxu0 0.0
  %1779 = vmatprep.subr.mxu0 0.0
  %1780 = vmatpush1.xpose.msra.mxu0 0.0
  %1781 = vmatprep.subr.mxu0 0.0
  %1782 = vmatpush1.xpose.msra.mxu0 0.0
  %1783 = vmatprep.subr.mxu0 0.0
  %1784 = vmatpush1.xpose.msra.mxu0 0.0
  %1785 = vmatprep.subr.mxu0 0.0
  %1786 = vmatpush1.xpose.msra.mxu0 0.0
  %1787 = vmatprep.subr.mxu0 0.0
  %1788 = vmatpush1.xpose.msra.mxu0 0.0
  %1789 = vmatprep.subr.mxu0 0.0
  %1790 = vmatpush1.xpose.msra.mxu0 0.0
  %1791 = vmatprep.mubr.f32.mxu0 0.0
  %1792 = vmatmul.mubr.f32.gmra.mrb[0].mxu0 1.0
  %v1793 = vpop.f32.mrb[0].mxu0
  %v1794 = vadd.f32 %v1676, %v1793
  %v1795 = vpop.f32.mrb[0].mxu0
  %1796 = vdwg.mxu0
  %1797 = vmatprep.subr.mxu0 0.0
  %v1798 = vand.u32 %v611, 4294901760
  %1799 = vmatpush1.xpose.msra.mxu0 %v1798
  %1800 = vmatprep.subr.mxu0 0.0
  %v1801 = vand.u32 %v612, 4294901760
  %1802 = vmatpush1.xpose.msra.mxu0 %v1801
  %1803 = vmatprep.subr.mxu0 0.0
  %v1804 = vand.u32 %v613, 4294901760
  %1805 = vmatpush1.xpose.msra.mxu0 %v1804
  %1806 = vmatprep.subr.mxu0 0.0
  %v1807 = vand.u32 %v614, 4294901760
  %1808 = vmatpush1.xpose.msra.mxu0 %v1807
  %1809 = vmatprep.subr.mxu0 0.0
  %v1810 = vand.u32 %v615, 4294901760
  %1811 = vmatpush1.xpose.msra.mxu0 %v1810
  %1812 = vmatprep.subr.mxu0 0.0
  %v1813 = vand.u32 %v616, 4294901760
  %1814 = vmatpush1.xpose.msra.mxu0 %v1813
  %1815 = vmatprep.subr.mxu0 0.0
  %v1816 = vand.u32 %v617, 4294901760
  %1817 = vmatpush1.xpose.msra.mxu0 %v1816
  %1818 = vmatprep.subr.mxu0 0.0
  %v1819 = vand.u32 %v618, 4294901760
  %1820 = vmatpush1.xpose.msra.mxu0 %v1819
  %1821 = vmatprep.subr.mxu0 0.0
  %v1822 = vand.u32 %v619, 4294901760
  %1823 = vmatpush1.xpose.msra.mxu0 %v1822
  %1824 = vmatprep.subr.mxu0 0.0
  %v1825 = vand.u32 %v620, 4294901760
  %1826 = vmatpush1.xpose.msra.mxu0 %v1825
  %1827 = vmatprep.subr.mxu0 0.0
  %v1828 = vand.u32 %v621, 4294901760
  %1829 = vmatpush1.xpose.msra.mxu0 %v1828
  %1830 = vmatprep.subr.mxu0 0.0
  %v1831 = vand.u32 %v622, 4294901760
  %1832 = vmatpush1.xpose.msra.mxu0 %v1831
  %1833 = vmatprep.subr.mxu0 0.0
  %v1834 = vand.u32 %v623, 4294901760
  %1835 = vmatpush1.xpose.msra.mxu0 %v1834
  %1836 = vmatprep.subr.mxu0 0.0
  %v1837 = vand.u32 %v624, 4294901760
  %1838 = vmatpush1.xpose.msra.mxu0 %v1837
  %1839 = vmatprep.subr.mxu0 0.0
  %v1840 = vand.u32 %v625, 4294901760
  %1841 = vmatpush1.xpose.msra.mxu0 %v1840
  %1842 = vmatprep.subr.mxu0 0.0
  %v1843 = vand.u32 %v626, 4294901760
  %1844 = vmatpush1.xpose.msra.mxu0 %v1843
  %1845 = vmatprep.subr.mxu0 0.0
  %1846 = vmatpush1.xpose.msra.mxu0 0.0
  %1847 = vmatprep.subr.mxu0 0.0
  %1848 = vmatpush1.xpose.msra.mxu0 0.0
  %1849 = vmatprep.subr.mxu0 0.0
  %1850 = vmatpush1.xpose.msra.mxu0 0.0
  %1851 = vmatprep.subr.mxu0 0.0
  %1852 = vmatpush1.xpose.msra.mxu0 0.0
  %1853 = vmatprep.subr.mxu0 0.0
  %1854 = vmatpush1.xpose.msra.mxu0 0.0
  %1855 = vmatprep.subr.mxu0 0.0
  %1856 = vmatpush1.xpose.msra.mxu0 0.0
  %1857 = vmatprep.subr.mxu0 0.0
  %1858 = vmatpush1.xpose.msra.mxu0 0.0
  %1859 = vmatprep.subr.mxu0 0.0
  %1860 = vmatpush1.xpose.msra.mxu0 0.0
  %1861 = vmatprep.subr.mxu0 0.0
  %1862 = vmatpush1.xpose.msra.mxu0 0.0
  %1863 = vmatprep.subr.mxu0 0.0
  %1864 = vmatpush1.xpose.msra.mxu0 0.0
  %1865 = vmatprep.subr.mxu0 0.0
  %1866 = vmatpush1.xpose.msra.mxu0 0.0
  %1867 = vmatprep.subr.mxu0 0.0
  %1868 = vmatpush1.xpose.msra.mxu0 0.0
  %1869 = vmatprep.subr.mxu0 0.0
  %1870 = vmatpush1.xpose.msra.mxu0 0.0
  %1871 = vmatprep.subr.mxu0 0.0
  %1872 = vmatpush1.xpose.msra.mxu0 0.0
  %1873 = vmatprep.subr.mxu0 0.0
  %1874 = vmatpush1.xpose.msra.mxu0 0.0
  %1875 = vmatprep.subr.mxu0 0.0
  %1876 = vmatpush1.xpose.msra.mxu0 0.0
  %1877 = vmatprep.mubr.f32.mxu0 0.0
  %1878 = vmatmul.mubr.f32.gmra.mrb[0].mxu0 1.0
  %v1879 = vpop.f32.mrb[0].mxu0
  %v1880 = vadd.f32 %v1794, %v1879
  %v1881 = vpop.f32.mrb[0].mxu0
  %1882 = vdwg.mxu0
  %v1883 = vrsqrt.pop %v1252
  %v1884 = vmul.f32 %v1252, %v1883
  %vm1885 = vcmp.eq.f32.partialorder %v1252, inf
  %v1886 = vsel %vm1885, %v1252, %v1884
  %vm1887 = vcmp.eq.f32.partialorder %v1252, 0.0
  %v1888 = vand.u32 %v1252, 2147483648
  %v1889 = vsel %vm1887, %v1888, %v1886
  %v1890 = vrsqrt.pop %v1880
  %v1891 = vmul.f32 %v1880, %v1890
  %vm1892 = vcmp.eq.f32.partialorder %v1880, inf
  %v1893 = vsel %vm1892, %v1880, %v1891
  %vm1894 = vcmp.eq.f32.partialorder %v1880, 0.0
  %v1895 = vand.u32 %v1880, 2147483648
  %v1896 = vsel %vm1894, %v1895, %v1893
  %1897 = vst [vmem:[%s3] sm:$0x1] %v1889
  %1898 = vst [vmem:[%s4] sm:$0x1] %v1896
  %v1899 = vlaneseq
  %v1900 = vand.u32 %v1899, 127
  %v1901 = vstv %s17
  %v1902 = vadd.s32 %v1901, %v1900
  %vm1903 = vcmp.lt.s32.totalorder %v1902, 8
  %v1904 = vsub.f32 %v1889, %v1896
  %v1905 = vadd.f32 %v1904, 1.0
  %v1906 = vmax.f32 %v1905, 0.0
  %v1907 = vsel %vm1903, %v1906, 0.0
  %1908 = vst [vmem:[%s5] sm:$0x1] %v1907
  // Predicated region
  $region266: #{transe_forward.1} parent=0 // pred_check
    _
  $region267: #{transe_forward.1} parent=0 // pred_check_branch
    %1910 = sbr.rel (0) target = $region269
  $region268: #{transe_forward.1} parent=0 // pred_region
    _
  $region269: #{transe_forward.1} parent=0 // pred_fallthru
    _
  // Predicated region
  $region270: #{transe_forward.1} parent=0 // pred_check
    _
  $region271: #{transe_forward.1} parent=0 // pred_check_branch
    %1912 = sbr.rel (0) target = $region273
  $region272: #{transe_forward.1} parent=0 // pred_region
    _
  $region273: #{transe_forward.1} parent=0 // pred_fallthru
    _
  // Predicated region
  $region274: #{transe_forward.1} parent=0 // pred_check
    _
  $region275: #{transe_forward.1} parent=0 // pred_check_branch
    %1914 = sbr.rel (0) target = $region277
  $region276: #{transe_forward.1} parent=0 // pred_region
    _
  $region277: #{transe_forward.1} parent=0 // pred_fallthru
    _
  // Predicated region
  $region278: #{transe_forward.1} parent=0 // pred_check
    _
  $region279: #{transe_forward.1} parent=0 // pred_check_branch
    %1916 = sbr.rel (0) target = $region281
  $region280: #{transe_forward.1} parent=0 // pred_region
    _
  $region281: #{transe_forward.1} parent=0 // pred_fallthru
    _
  // Predicated region
  $region282: #{transe_forward.1} parent=0 // pred_check
    _
  $region283: #{transe_forward.1} parent=0 // pred_check_branch
    %1918 = sbr.rel (0) target = $region285
  $region284: #{transe_forward.1} parent=0 // pred_region
    _
  $region285: #{transe_forward.1} parent=0 // pred_fallthru
    _
  // Predicated region
  $region286: #{transe_forward.1} parent=0 // pred_check
    _
  $region287: #{transe_forward.1} parent=0 // pred_check_branch
    %1920 = sbr.rel (0) target = $region289
  $region288: #{transe_forward.1} parent=0 // pred_region
    _
  $region289: #{transe_forward.1} parent=0 // pred_fallthru
    _
  %1921 = vsyncmov [#allocation8]
  %s1922 = vpop.sfrf %1921
  %p1923 = scmp.eq.s32.totalorder %s1922, 0
  %p1924 = pneg %p1923
  %1926 = shalt.err (%p1924)
  %s1927 = scalar_lea.sflag [#allocation8], 1
  %1928 = vsyncmov %s1927
  %s1929 = vpop.sfrf %1928
  %p1930 = scmp.eq.s32.totalorder %s1929, 0
  %p1931 = pneg %p1930
  %1933 = shalt.err (%p1931)
  %s1934 = scalar_lea.sflag [#allocation8], 2
  %1935 = vsyncmov %s1934
  %s1936 = vpop.sfrf %1935
  %p1937 = scmp.eq.s32.totalorder %s1936, 0
  %p1938 = pneg %p1937
  %1940 = shalt.err (%p1938)
  %s1941 = scalar_lea.sflag [#allocation8], 3
  %1942 = vsyncmov %s1941
  %s1943 = vpop.sfrf %1942
  %p1944 = scmp.eq.s32.totalorder %s1943, 0
  %p1945 = pneg %p1944
  %1947 = shalt.err (%p1945)
  %s1948 = scalar_lea.sflag [#allocation8], 4
  %1949 = vsyncmov %s1948
  %s1950 = vpop.sfrf %1949
  %p1951 = scmp.eq.s32.totalorder %s1950, 0
  %p1952 = pneg %p1951
  %1954 = shalt.err (%p1952)
  %s1955 = scalar_lea.sflag [#allocation8], 5
  %1956 = vsyncmov %s1955
  %s1957 = vpop.sfrf %1956
  %p1958 = scmp.eq.s32.totalorder %s1957, 0
  %p1959 = pneg %p1958
  %1961 = shalt.err (%p1959)

</llo_original>
